<compile_context>
chip_gen: v7x
topology: tpu7x:2x2x1
jax: 0.10.0
libtpu: 0.0.40
codegen_flags: <defaults>
</compile_context>

<pallas_src>
import jax
import jax.numpy as jnp
from jax.experimental import pallas as pl
from jax.experimental.pallas import tpu as pltpu


def cbow_kernel(ids_ref, emb_ref, w1_ref, b1_ref, w2_ref, b2_ref,
                out_ref, h_ref):
    # ids_ref : VMEM (TB, C) int32        (current batch tile's context ids)
    # emb_ref : VMEM (V, E)  bf16         (embedding table, resident)
    # w1_ref  : VMEM (E, H)  bf16, b1_ref (1, H) f32       (resident)
    # w2_ref  : VMEM (H, TN) bf16, b2_ref (1, TN) f32      (vocab tile)
    # out_ref : VMEM (TB, TN) f32         (current (batch, vocab) tile)
    # h_ref   : VMEM (TB, H) bf16 scratch (hidden acts, cached across vocab tiles)
    V = emb_ref.shape[0]
    TB, C = ids_ref.shape

    # Hidden activations are computed once per batch tile (vocab-tile 0).
    @pl.when(pl.program_id(1) == 0)
    def _():
        ids = ids_ref[...]                                         # (TB, C) i32
        vocab_iota = jax.lax.broadcasted_iota(jnp.int32, (TB, V), 1)
        counts = jnp.zeros((TB, V), jnp.float32)
        for c in range(C):                                         # static unroll
            counts = counts + (ids[:, c:c + 1] == vocab_iota).astype(jnp.float32)
        # Embedding bag-sum as a matmul on the MXU (bf16 in, f32 accumulate).
        emb_sum = jnp.dot(counts.astype(emb_ref.dtype), emb_ref[...],
                          preferred_element_type=jnp.float32)       # (TB, E)
        h = jnp.dot(emb_sum.astype(w1_ref.dtype), w1_ref[...],
                    preferred_element_type=jnp.float32) + b1_ref[...]
        h_ref[...] = jnp.maximum(h, 0.0).astype(h_ref.dtype)

    # Second linear layer over the current lane-dense vocab tile.
    out = jnp.dot(h_ref[...], w2_ref[...],
                  preferred_element_type=jnp.float32) + b2_ref[...]
    out_ref[...] = out.astype(out_ref.dtype)


def cbow_forward(ids, emb, w1, b1, w2, b2, *, tb=128, tn=256,
                 mxu_dtype=jnp.bfloat16):
    """ids: (B, C) int32; emb: (V, E); w1: (E, H); b1: (1, H); w2: (H, V); b2: (1, V)."""
    B, C = ids.shape
    V, E = emb.shape
    H = w1.shape[1]
    assert B % tb == 0 and tb % 8 == 0, "batch must be a multiple of the tile"
    assert V % tn == 0 and tn % 128 == 0, "vocab tile must be lane-dense"
    assert E % 128 == 0 and H % 128 == 0

    ids = ids.astype(jnp.int32)
    emb_m = emb.astype(mxu_dtype)
    w1_m = w1.astype(mxu_dtype)
    w2_m = w2.astype(mxu_dtype)
    b1 = b1.astype(jnp.float32)
    b2 = b2.astype(jnp.float32)

    grid_spec = pltpu.PrefetchScalarGridSpec(
        num_scalar_prefetch=0,
        grid=(B // tb, V // tn),
        in_specs=[
            # Per-batch-tile context ids (full context dim C in one block).
            pl.BlockSpec((tb, C), lambda i, j: (i, 0)),
            # Constant block index -> stay VMEM-resident across all steps.
            pl.BlockSpec((V, E), lambda i, j: (0, 0)),
            pl.BlockSpec((E, H), lambda i, j: (0, 0)),
            pl.BlockSpec((1, H), lambda i, j: (0, 0)),
            # Vocab-tiled second layer: lane-dense (H, tn) / (1, tn) blocks.
            pl.BlockSpec((H, tn), lambda i, j: (0, j)),
            pl.BlockSpec((1, tn), lambda i, j: (0, j)),
        ],
        out_specs=pl.BlockSpec((tb, tn), lambda i, j: (i, j)),
        scratch_shapes=[pltpu.VMEM((tb, H), mxu_dtype)],
    )

    return pl.pallas_call(
        cbow_kernel,
        out_shape=jax.ShapeDtypeStruct((B, V), jnp.float32),
        grid_spec=grid_spec,
        compiler_params=pltpu.CompilerParams(
            dimension_semantics=("parallel", "arbitrary"),
            vmem_limit_bytes=64 * 1024 * 1024,
        ),
    )(ids, emb_m, w1_m, b1, w2_m, b2)


def cbow_reference(ids, emb, w1, b1, w2, b2):
    emb_sum = jnp.sum(jnp.take(emb, ids, axis=0), axis=1)          # (B, E)
    h = jnp.maximum(emb_sum @ w1 + b1, 0.0)                        # (B, 128)
    return h @ w2 + b2                                             # (B, V)


if __name__ == "__main__":
    # Module hyperparameters (small, TPU-tile-friendly).
    VOCAB = 512          # vocab_size (multiple of TN -> lane-dense out tiles)
    EMB = 128            # embedding_size
    HIDDEN = 128         # hardcoded hidden width in the nn.Sequential
    WINDOW = 2           # window_size -> context length C = 2*WINDOW = 4
    BATCH = 512          # >= 4*TB -> >= 2 grid steps per TensorCore on v7x
    TB, TN = 128, 256

    key = jax.random.PRNGKey(0)
    k_emb, k_w1, k_b1, k_w2, k_b2, k_ids = jax.random.split(key, 6)

    # Deterministic parameter init (shapes from CBOW.__init__, linear weights
    # stored transposed as (in_features, out_features); biases kept 2-D).
    emb_table = jax.random.normal(k_emb, (VOCAB, EMB), jnp.float32) * 0.1
    w1 = jax.random.normal(k_w1, (EMB, HIDDEN), jnp.float32) * 0.05
    b1 = jax.random.normal(k_b1, (1, HIDDEN), jnp.float32) * 0.01
    w2 = jax.random.normal(k_w2, (HIDDEN, VOCAB), jnp.float32) * 0.05
    b2 = jax.random.normal(k_b2, (1, VOCAB), jnp.float32) * 0.01

    # Context-word indices: (batch, 2*window_size) int32 in [0, VOCAB).
    ids = jax.random.randint(k_ids, (BATCH, 2 * WINDOW), 0, VOCAB, jnp.int32)

    out = cbow_forward(ids, emb_table, w1, b1, w2, b2, tb=TB, tn=TN)
    out = jax.block_until_ready(out)

    ref = cbow_reference(ids, emb_table, w1, b1, w2, b2)
    assert out.shape == (BATCH, VOCAB)
    # bf16 MXU inputs (f32 accumulation) vs the pure-f32 reference -> loosened
    # tolerance, as flagged in the review's correctness notes.
    assert jnp.allclose(out, ref, atol=2e-2, rtol=2e-2)

    print("KERNEL_OK")
</pallas_src>

<mosaic_0001>
module attributes {stable_mosaic.version = 11 : i64} {
  func.func @cbow_kernel(%arg0: i32, %arg1: i32, %arg2: memref<128x4xi32, #tpu.memory_space<vmem>>, %arg3: memref<512x128xbf16, #tpu.memory_space<vmem>>, %arg4: memref<128x128xbf16, #tpu.memory_space<vmem>>, %arg5: memref<1x128xf32, #tpu.memory_space<vmem>>, %arg6: memref<128x256xbf16, #tpu.memory_space<vmem>>, %arg7: memref<1x256xf32, #tpu.memory_space<vmem>>, %arg8: memref<128x256xf32, #tpu.memory_space<vmem>>, %arg9: memref<128x128xbf16, #tpu.memory_space<vmem>>) attributes {dimension_semantics = [#tpu.dimension_semantics<parallel>, #tpu.dimension_semantics<arbitrary>], iteration_bounds = array<i64: 4, 2>, scalar_prefetch = 0 : i64, scratch_operands = 1 : i64, tpu.core_type = #tpu.core_type<tc>, window_params = [{transform_indices = @transform_0, window_bounds = array<i64: 128, 4>}, {pipeline_mode = #tpu.pipeline_mode<synchronous>, transform_indices = @transform_1, window_bounds = array<i64: 512, 128>}, {pipeline_mode = #tpu.pipeline_mode<synchronous>, transform_indices = @transform_2, window_bounds = array<i64: 128, 128>}, {pipeline_mode = #tpu.pipeline_mode<synchronous>, transform_indices = @transform_3, window_bounds = array<i64: 1, 128>}, {transform_indices = @transform_4, window_bounds = array<i64: 128, 256>}, {transform_indices = @transform_5, window_bounds = array<i64: 1, 256>}, {transform_indices = @transform_6, window_bounds = array<i64: 128, 256>}]} {
    %c0_i32 = arith.constant 0 : i32
    %0 = arith.cmpi eq, %arg1, %c0_i32 : i32
    %1 = arith.extui %0 : i1 to i32
    %c0_i32_0 = arith.constant 0 : i32
    %2 = arith.cmpi ne, %1, %c0_i32_0 : i32
    scf.if %2 {
      %c0_8 = arith.constant 0 : index
      %c0_9 = arith.constant 0 : index
      %10 = vector.load %arg2[%c0_8, %c0_9] : memref<128x4xi32, #tpu.memory_space<vmem>>, vector<128x4xi32>
      %11 = tpu.iota {dimensions = array<i32: 1>} : vector<128x512xi32>
      %cst_10 = arith.constant 0.000000e+00 : f32
      %12 = vector.broadcast %cst_10 : f32 to vector<128x512xf32>
      %13 = vector.extract_strided_slice %10 {offsets = [0, 0], sizes = [128, 1], strides = [1, 1]} : vector<128x4xi32> to vector<128x1xi32>
      %14 = vector.broadcast %13 : vector<128x1xi32> to vector<128x512xi32>
      %15 = arith.cmpi eq, %14, %11 : vector<128x512xi32>
      %16 = arith.extui %15 : vector<128x512xi1> to vector<128x512xi32>
      %17 = arith.sitofp %16 : vector<128x512xi32> to vector<128x512xf32>
      %18 = arith.addf %12, %17 : vector<128x512xf32>
      %19 = vector.extract_strided_slice %10 {offsets = [0, 1], sizes = [128, 1], strides = [1, 1]} : vector<128x4xi32> to vector<128x1xi32>
      %20 = vector.broadcast %19 : vector<128x1xi32> to vector<128x512xi32>
      %21 = arith.cmpi eq, %20, %11 : vector<128x512xi32>
      %22 = arith.extui %21 : vector<128x512xi1> to vector<128x512xi32>
      %23 = arith.sitofp %22 : vector<128x512xi32> to vector<128x512xf32>
      %24 = arith.addf %18, %23 : vector<128x512xf32>
      %25 = vector.extract_strided_slice %10 {offsets = [0, 2], sizes = [128, 1], strides = [1, 1]} : vector<128x4xi32> to vector<128x1xi32>
      %26 = vector.broadcast %25 : vector<128x1xi32> to vector<128x512xi32>
      %27 = arith.cmpi eq, %26, %11 : vector<128x512xi32>
      %28 = arith.extui %27 : vector<128x512xi1> to vector<128x512xi32>
      %29 = arith.sitofp %28 : vector<128x512xi32> to vector<128x512xf32>
      %30 = arith.addf %24, %29 : vector<128x512xf32>
      %31 = vector.extract_strided_slice %10 {offsets = [0, 3], sizes = [128, 1], strides = [1, 1]} : vector<128x4xi32> to vector<128x1xi32>
      %32 = vector.broadcast %31 : vector<128x1xi32> to vector<128x512xi32>
      %33 = arith.cmpi eq, %32, %11 : vector<128x512xi32>
      %34 = arith.extui %33 : vector<128x512xi1> to vector<128x512xi32>
      %35 = arith.sitofp %34 : vector<128x512xi32> to vector<128x512xf32>
      %36 = arith.addf %30, %35 : vector<128x512xf32>
      %37 = arith.truncf %36 : vector<128x512xf32> to vector<128x512xbf16>
      %c0_11 = arith.constant 0 : index
      %c0_12 = arith.constant 0 : index
      %38 = vector.load %arg3[%c0_11, %c0_12] : memref<512x128xbf16, #tpu.memory_space<vmem>>, vector<512x128xbf16>
      %cst_13 = arith.constant dense<0.000000e+00> : vector<128x128xf32>
      %39 = tpu.matmul %37, %38, %cst_13 {dimension_numbers = #tpu.dot_dimension_numbers<[1], [0], [0], [1], [0, 0, 1, 1], [], []>} : vector<128x512xbf16>, vector<512x128xbf16>, vector<128x128xf32> -> vector<128x128xf32>
      %40 = arith.truncf %39 : vector<128x128xf32> to vector<128x128xbf16>
      %c0_14 = arith.constant 0 : index
      %c0_15 = arith.constant 0 : index
      %41 = vector.load %arg4[%c0_14, %c0_15] : memref<128x128xbf16, #tpu.memory_space<vmem>>, vector<128x128xbf16>
      %cst_16 = arith.constant dense<0.000000e+00> : vector<128x128xf32>
      %42 = tpu.matmul %40, %41, %cst_16 {dimension_numbers = #tpu.dot_dimension_numbers<[1], [0], [0], [1], [0, 0, 1, 1], [], []>} : vector<128x128xbf16>, vector<128x128xbf16>, vector<128x128xf32> -> vector<128x128xf32>
      %c0_17 = arith.constant 0 : index
      %c0_18 = arith.constant 0 : index
      %43 = vector.load %arg5[%c0_17, %c0_18] : memref<1x128xf32, #tpu.memory_space<vmem>>, vector<1x128xf32>
      %44 = vector.broadcast %43 : vector<1x128xf32> to vector<128x128xf32>
      %45 = arith.addf %42, %44 : vector<128x128xf32>
      %cst_19 = arith.constant 0.000000e+00 : f32
      %46 = vector.broadcast %cst_19 : f32 to vector<128x128xf32>
      %47 = arith.maximumf %45, %46 : vector<128x128xf32>
      %48 = arith.truncf %47 : vector<128x128xf32> to vector<128x128xbf16>
      %c0_20 = arith.constant 0 : index
      %c0_21 = arith.constant 0 : index
      %49 = vector.load %arg9[%c0_20, %c0_21] : memref<128x128xbf16, #tpu.memory_space<vmem>>, vector<128x128xbf16>
      tpu.vector_store %arg9[%c0_20, %c0_21], %48 {strides = array<i32>} : memref<128x128xbf16, #tpu.memory_space<vmem>>, vector<128x128xbf16>,
    } else {
    }
    %c0 = arith.constant 0 : index
    %c0_1 = arith.constant 0 : index
    %3 = vector.load %arg9[%c0, %c0_1] : memref<128x128xbf16, #tpu.memory_space<vmem>>, vector<128x128xbf16>
    %c0_2 = arith.constant 0 : index
    %c0_3 = arith.constant 0 : index
    %4 = vector.load %arg6[%c0_2, %c0_3] : memref<128x256xbf16, #tpu.memory_space<vmem>>, vector<128x256xbf16>
    %cst = arith.constant dense<0.000000e+00> : vector<128x256xf32>
    %5 = tpu.matmul %3, %4, %cst {dimension_numbers = #tpu.dot_dimension_numbers<[1], [0], [0], [1], [0, 0, 1, 1], [], []>} : vector<128x128xbf16>, vector<128x256xbf16>, vector<128x256xf32> -> vector<128x256xf32>
    %c0_4 = arith.constant 0 : index
    %c0_5 = arith.constant 0 : index
    %6 = vector.load %arg7[%c0_4, %c0_5] : memref<1x256xf32, #tpu.memory_space<vmem>>, vector<1x256xf32>
    %7 = vector.broadcast %6 : vector<1x256xf32> to vector<128x256xf32>
    %8 = arith.addf %5, %7 : vector<128x256xf32>
    %c0_6 = arith.constant 0 : index
    %c0_7 = arith.constant 0 : index
    %9 = vector.load %arg8[%c0_6, %c0_7] : memref<128x256xf32, #tpu.memory_space<vmem>>, vector<128x256xf32>
    tpu.vector_store %arg8[%c0_6, %c0_7], %8 {strides = array<i32>} : memref<128x256xf32, #tpu.memory_space<vmem>>, vector<128x256xf32>,
    return
  }
  func.func @transform_0(%arg0: i32, %arg1: i32) -> (i32, i32) {
    %c0_i32 = arith.constant 0 : i32
    %c0_i32_0 = arith.constant 0 : i32
    return %arg0, %c0_i32 : i32, i32
  }
  func.func @transform_1(%arg0: i32, %arg1: i32) -> (i32, i32) {
    %c0_i32 = arith.constant 0 : i32
    %c0_i32_0 = arith.constant 0 : i32
    %c0_i32_1 = arith.constant 0 : i32
    return %c0_i32, %c0_i32_0 : i32, i32
  }
  func.func @transform_2(%arg0: i32, %arg1: i32) -> (i32, i32) {
    %c0_i32 = arith.constant 0 : i32
    %c0_i32_0 = arith.constant 0 : i32
    %c0_i32_1 = arith.constant 0 : i32
    return %c0_i32, %c0_i32_0 : i32, i32
  }
  func.func @transform_3(%arg0: i32, %arg1: i32) -> (i32, i32) {
    %c0_i32 = arith.constant 0 : i32
    %c0_i32_0 = arith.constant 0 : i32
    %c0_i32_1 = arith.constant 0 : i32
    return %c0_i32, %c0_i32_0 : i32, i32
  }
  func.func @transform_4(%arg0: i32, %arg1: i32) -> (i32, i32) {
    %c0_i32 = arith.constant 0 : i32
    %c0_i32_0 = arith.constant 0 : i32
    return %c0_i32, %arg1 : i32, i32
  }
  func.func @transform_5(%arg0: i32, %arg1: i32) -> (i32, i32) {
    %c0_i32 = arith.constant 0 : i32
    %c0_i32_0 = arith.constant 0 : i32
    return %c0_i32, %arg1 : i32, i32
  }
  func.func @transform_6(%arg0: i32, %arg1: i32) -> (i32, i32) {
    %c0_i32 = arith.constant 0 : i32
    return %arg0, %arg1 : i32, i32
  }
}

</mosaic_0001>

<llo_original>
// kernel: tpu_custom_call.1
$region0: #{tpu_custom_call.1}
  #allocation0 [shape = 'u32[]', space=smem, size = 0x4, offset = 0x4, fixed_abs, tag = 'smem constant byte address 0x4 - core index']
  #allocation1 [shape = 'u32[144,128]{1,0:T(1,128)}', space=vmem, size = 0x12000, scoped, tag = 'internal scratch']
  #allocation2 [shape = 'bf16[128,128]{1,0:T(16,128)(2,1)}', space=vmem, size = 0x8000, scoped, tag = 'scratch operand']
  %s0 = inlined_call_operand.hbm [shape: s32[512,4], index: 0, kind: input, shape index: {}]
  %s1 = inlined_call_operand.hbm [shape: bf16[512,128], index: 1, kind: input, shape index: {}]
  %s2 = inlined_call_operand.hbm [shape: bf16[128,128], index: 2, kind: input, shape index: {}]
  %s3 = inlined_call_operand.hbm [shape: f32[1,128], index: 3, kind: input, shape index: {}]
  %s4 = inlined_call_operand.hbm [shape: bf16[128,512], index: 4, kind: input, shape index: {}]
  %s5 = inlined_call_operand.hbm [shape: f32[1,512], index: 5, kind: input, shape index: {}]
  %s6 = inlined_call_operand.hbm [shape: f32[512,512], index: 6, kind: output, shape index: {}]
  %s7 = sld [smem:[#allocation0]]
  $region85: #{tpu_custom_call.1} parent=0
    _
  %s9 = ssub.s32 1, %s7
  %s10 = scalar_select 0, %s9, %s7
  $region1: #{tpu_custom_call.1} parent=0
    #allocation3 [shape = 'u8[131072]{0}', space=vmem, size = 0x20000, scoped, tag = 'input window, operand 0']
    #allocation4 [shape = 's32[2]{0}', space=sflag, size = 0x8, scoped, tag = 'scoped memory for tpu_custom_call.1']
    #allocation5 [shape = 's32[2]{0}', space=sflag, size = 0x8, scoped, tag = 'scoped memory for tpu_custom_call.1']
    #allocation6 [shape = 'u8[131072]{0}', space=vmem, size = 0x20000, scoped, tag = 'input window, operand 1, single buffered']
    #allocation7 [shape = 's32[1]{0}', space=sflag, size = 0x4, scoped, tag = 'scoped memory for tpu_custom_call.1']
    #allocation8 [shape = 'u8[32768]{0}', space=vmem, size = 0x8000, scoped, tag = 'input window, operand 2, single buffered']
    #allocation9 [shape = 'u8[512]{0}', space=vmem, size = 0x400, scoped, tag = 'input window, operand 3, single buffered']
    #allocation10 [shape = 's32[1]{0}', space=sflag, size = 0x4, scoped, tag = 'scoped memory for tpu_custom_call.1']
    #allocation11 [shape = 'u8[131072]{0}', space=vmem, size = 0x20000, scoped, tag = 'input window, operand 4']
    #allocation12 [shape = 'u8[2048]{0}', space=vmem, size = 0x800, scoped, tag = 'input window, operand 5']
    #allocation13 [shape = 'u8[262144]{0}', space=vmem, size = 0x40000, scoped, tag = 'output window, operand 0']
    %11 = vsyncpa [#allocation4], 0
    %s12 = scalar_lea.sflag [#allocation4], 1
    %13 = vsyncpa %s12, 0
    %14 = vsyncpa [#allocation7], 0
    %15 = vsyncpa [#allocation10], 0
    %16 = vsyncpa [#allocation5], 0
    %s17 = scalar_lea.sflag [#allocation5], 1
    %18 = vsyncpa %s17, 0
    loop: start=0, step=1, limit=10
    $region2: #{tpu_custom_call.1} parent=1 // loop_pre_header
      _
    $region3: #{tpu_custom_call.1} parent=1 // loop_header
      %s20 = sphi 0, %s24
      %p21 = scmp.ge.s32.totalorder %s20, 10
      %s27 = sphi 0, %s39
      %s28 = sphi 0, %s35
      %s29 = sphi 0, %s27
      %s30 = sphi 0, %s28
      %s31 = sphi 0, %s29
      %s32 = sphi 0, %s30
      %s42 = sphi 0, %s44
      %s45 = sphi 0, %s42
      %s46 = sphi 0, %s45
      %s62 = sphi 0, %s46
      %s66 = sphi 0, %s66
      %s68 = sphi 0, %s66
      %s69 = sphi 0, %s68
      %s83 = sphi 0, %s69
      %s87 = sphi 0, %s87
      %s89 = sphi 0, %s87
      %s90 = sphi 0, %s89
      %s104 = sphi 0, %s90
      %s108 = sphi 0, %s108
      %s110 = sphi 0, %s108
      %s111 = sphi 0, %s110
      %s125 = sphi 0, %s111
      %s131 = sphi 0, %s133
      %s134 = sphi 0, %s131
      %s135 = sphi 0, %s134
      %s151 = sphi 0, %s135
      %s157 = sphi 0, %s159
      %s160 = sphi 0, %s157
      %s161 = sphi 0, %s160
      %s177 = sphi 0, %s161
      %s185 = sphi 0, %s187
      %s188 = sphi 0, %s185
      %s189 = sphi 0, %s188
      %s205 = sphi 0, %s189
    $region4: #{tpu_custom_call.1} parent=1 // loop_header_branch
      %23 = sbr.rel (%p21) target = $region8
    $region5: #{tpu_custom_call.1} parent=1 // loop_body
      %s25 = ssub.s32 %s20, 1
      %s26 = ssub.s32 %s20, 2
      %s33 = sadd.s32 1, %s28
      %p34 = scmp.ge.s32.totalorder %s33, 2
      %s35 = scalar_select %p34, 0, %s33
      %s36 = sadd.s32 1, %s27
      %s37 = scalar_select %p34, %s36, %s27
      %p38 = scmp.ge.s32.totalorder %s37, 4
      %s39 = scalar_select %p38, 0, %s37
      %s40 = ssub.s32 %s27, %s39
      %p41 = scmp.eq.s32.totalorder %s40, 0
      %s43 = sadd.s32 %s42, 1
      %s44 = scalar_select %p41, %s42, %s43
      %p47 = pneg %p41
      %p48 = scmp.eq.s32.totalorder %s20, 7
      %p49 = por %p47, %p48
      %p50 = scmp.ne.s32.totalorder %s42, %s45
      %p51 = scmp.eq.s32.totalorder %s20, 0
      %p52 = por %p50, %p51
      %p53 = scmp.ne.s32.totalorder %s42, %s45
      %p54 = scmp.eq.s32.totalorder %s25, 7
      %p55 = por %p53, %p54
      %p56 = scmp.ne.s32.totalorder %s45, %s46
      %p57 = scmp.eq.s32.totalorder %s25, 0
      %p58 = por %p56, %p57
      %p59 = scmp.ne.s32.totalorder %s45, %s46
      %p60 = scmp.eq.s32.totalorder %s26, 7
      %p61 = por %p59, %p60
      %p63 = scmp.ne.s32.totalorder %s46, %s62
      %p64 = scmp.eq.s32.totalorder %s26, 0
      %p65 = por %p63, %p64
      %s67 = sadd.s32 %s66, 1
      %p70 = scmp.eq.s32.totalorder %s20, 7
      %p71 = scmp.ne.s32.totalorder %s66, %s68
      %p72 = scmp.eq.s32.totalorder %s20, 0
      %p73 = por %p71, %p72
      %p74 = scmp.ne.s32.totalorder %s66, %s68
      %p75 = scmp.eq.s32.totalorder %s25, 7
      %p76 = por %p74, %p75
      %p77 = scmp.ne.s32.totalorder %s68, %s69
      %p78 = scmp.eq.s32.totalorder %s25, 0
      %p79 = por %p77, %p78
      %p80 = scmp.ne.s32.totalorder %s68, %s69
      %p81 = scmp.eq.s32.totalorder %s26, 7
      %p82 = por %p80, %p81
      %p84 = scmp.ne.s32.totalorder %s69, %s83
      %p85 = scmp.eq.s32.totalorder %s26, 0
      %p86 = por %p84, %p85
      %s88 = sadd.s32 %s87, 1
      %p91 = scmp.eq.s32.totalorder %s20, 7
      %p92 = scmp.ne.s32.totalorder %s87, %s89
      %p93 = scmp.eq.s32.totalorder %s20, 0
      %p94 = por %p92, %p93
      %p95 = scmp.ne.s32.totalorder %s87, %s89
      %p96 = scmp.eq.s32.totalorder %s25, 7
      %p97 = por %p95, %p96
      %p98 = scmp.ne.s32.totalorder %s89, %s90
      %p99 = scmp.eq.s32.totalorder %s25, 0
      %p100 = por %p98, %p99
      %p101 = scmp.ne.s32.totalorder %s89, %s90
      %p102 = scmp.eq.s32.totalorder %s26, 7
      %p103 = por %p101, %p102
      %p105 = scmp.ne.s32.totalorder %s90, %s104
      %p106 = scmp.eq.s32.totalorder %s26, 0
      %p107 = por %p105, %p106
      %s109 = sadd.s32 %s108, 1
      %p112 = scmp.eq.s32.totalorder %s20, 7
      %p113 = scmp.ne.s32.totalorder %s108, %s110
      %p114 = scmp.eq.s32.totalorder %s20, 0
      %p115 = por %p113, %p114
      %p116 = scmp.ne.s32.totalorder %s108, %s110
      %p117 = scmp.eq.s32.totalorder %s25, 7
      %p118 = por %p116, %p117
      %p119 = scmp.ne.s32.totalorder %s110, %s111
      %p120 = scmp.eq.s32.totalorder %s25, 0
      %p121 = por %p119, %p120
      %p122 = scmp.ne.s32.totalorder %s110, %s111
      %p123 = scmp.eq.s32.totalorder %s26, 7
      %p124 = por %p122, %p123
      %p126 = scmp.ne.s32.totalorder %s111, %s125
      %p127 = scmp.eq.s32.totalorder %s26, 0
      %p128 = por %p126, %p127
      %s129 = ssub.s32 %s28, %s35
      %p130 = scmp.eq.s32.totalorder %s129, 0
      %s132 = sadd.s32 %s131, 1
      %s133 = scalar_select %p130, %s131, %s132
      %p136 = pneg %p130
      %p137 = scmp.eq.s32.totalorder %s20, 7
      %p138 = por %p136, %p137
      %p139 = scmp.ne.s32.totalorder %s131, %s134
      %p140 = scmp.eq.s32.totalorder %s20, 0
      %p141 = por %p139, %p140
      %p142 = scmp.ne.s32.totalorder %s131, %s134
      %p143 = scmp.eq.s32.totalorder %s25, 7
      %p144 = por %p142, %p143
      %p145 = scmp.ne.s32.totalorder %s134, %s135
      %p146 = scmp.eq.s32.totalorder %s25, 0
      %p147 = por %p145, %p146
      %p148 = scmp.ne.s32.totalorder %s134, %s135
      %p149 = scmp.eq.s32.totalorder %s26, 7
      %p150 = por %p148, %p149
      %p152 = scmp.ne.s32.totalorder %s135, %s151
      %p153 = scmp.eq.s32.totalorder %s26, 0
      %p154 = por %p152, %p153
      %s155 = ssub.s32 %s28, %s35
      %p156 = scmp.eq.s32.totalorder %s155, 0
      %s158 = sadd.s32 %s157, 1
      %s159 = scalar_select %p156, %s157, %s158
      %p162 = pneg %p156
      %p163 = scmp.eq.s32.totalorder %s20, 7
      %p164 = por %p162, %p163
      %p165 = scmp.ne.s32.totalorder %s157, %s160
      %p166 = scmp.eq.s32.totalorder %s20, 0
      %p167 = por %p165, %p166
      %p168 = scmp.ne.s32.totalorder %s157, %s160
      %p169 = scmp.eq.s32.totalorder %s25, 7
      %p170 = por %p168, %p169
      %p171 = scmp.ne.s32.totalorder %s160, %s161
      %p172 = scmp.eq.s32.totalorder %s25, 0
      %p173 = por %p171, %p172
      %p174 = scmp.ne.s32.totalorder %s160, %s161
      %p175 = scmp.eq.s32.totalorder %s26, 7
      %p176 = por %p174, %p175
      %p178 = scmp.ne.s32.totalorder %s161, %s177
      %p179 = scmp.eq.s32.totalorder %s26, 0
      %p180 = por %p178, %p179
      %s181 = ssub.s32 %s27, %s39
      %s182 = ssub.s32 %s28, %s35
      %s183 = sor.u32 %s181, %s182
      %p184 = scmp.eq.s32.totalorder %s183, 0
      %s186 = sadd.s32 %s185, 1
      %s187 = scalar_select %p184, %s185, %s186
      %p190 = pneg %p184
      %p191 = scmp.eq.s32.totalorder %s20, 7
      %p192 = por %p190, %p191
      %p193 = scmp.ne.s32.totalorder %s185, %s188
      %p194 = scmp.eq.s32.totalorder %s20, 0
      %p195 = por %p193, %p194
      %p196 = scmp.ne.s32.totalorder %s185, %s188
      %p197 = scmp.eq.s32.totalorder %s25, 7
      %p198 = por %p196, %p197
      %p199 = scmp.ne.s32.totalorder %s188, %s189
      %p200 = scmp.eq.s32.totalorder %s25, 0
      %p201 = por %p199, %p200
      %p202 = scmp.ne.s32.totalorder %s188, %s189
      %p203 = scmp.eq.s32.totalorder %s26, 7
      %p204 = por %p202, %p203
      %p206 = scmp.ne.s32.totalorder %s189, %s205
      %p207 = scmp.eq.s32.totalorder %s26, 0
      %p208 = por %p206, %p207
      %p209 = scmp.le.s32.totalorder 1, %s20
      %p210 = scmp.lt.s32.totalorder %s20, 9
      %p211 = pnand %p209, %p210
      %p212 = pneg %p211
      // Predicated region
      $region9: #{tpu_custom_call.1} parent=5 // pred_check
        _
      $region10: #{tpu_custom_call.1} parent=5 // pred_check_branch
        %214 = sbr.rel (%p211) target = $region12
      $region11: #{tpu_custom_call.1} parent=5 // pred_region
        %s215 = ssub.s32 %s20, 1
        // Predicated region
        $region13: #{tpu_custom_call.1} parent=11 // pred_check
          %p216 = pneg %p79
        $region14: #{tpu_custom_call.1} parent=11 // pred_check_branch
          %218 = sbr.rel (%p216) target = $region16
        $region15: #{tpu_custom_call.1} parent=11 // pred_region
          %s220 = ssub.s32 4096, 4096
          %221 = vsyncadd [#allocation7], %s220
          %s222 = sshll.u32 [#allocation6], 4
          %s223 = int_to_ptr.vmem [resolvable:$true] %s222
          %228 = dma.hbm_to_vmem [thread:$0]  %s1, 4096, %s223, [#allocation7], 64, 64, 4
        $region16: #{tpu_custom_call.1} parent=11 // pred_fallthru
          _
        // Predicated region
        $region17: #{tpu_custom_call.1} parent=11 // pred_check
          %p229 = pneg %p100
        $region18: #{tpu_custom_call.1} parent=11 // pred_check_branch
          %231 = sbr.rel (%p229) target = $region20
        $region19: #{tpu_custom_call.1} parent=11 // pred_region
          %s233 = ssub.s32 1024, 1024
          %234 = vsyncadd [#allocation7], %s233
          %s235 = sshll.u32 [#allocation8], 4
          %s236 = int_to_ptr.vmem [resolvable:$true] %s235
          %241 = dma.hbm_to_vmem [thread:$0]  %s2, 1024, %s236, [#allocation7], 64, 64, 4
        $region20: #{tpu_custom_call.1} parent=11 // pred_fallthru
          _
        // Predicated region
        $region21: #{tpu_custom_call.1} parent=11 // pred_check
          %p242 = pneg %p121
        $region22: #{tpu_custom_call.1} parent=11 // pred_check_branch
          %244 = sbr.rel (%p242) target = $region24
        $region23: #{tpu_custom_call.1} parent=11 // pred_region
          %s246 = ssub.s32 16, 16
          %247 = vsyncadd [#allocation10], %s246
          %s249 = sshll.u32 [#allocation9], 4
          %s250 = int_to_ptr.vmem [resolvable:$true] %s249
          %252 = dma.hbm_to_vmem [thread:$0]  %s3, 16, %s250, [#allocation10]
        $region24: #{tpu_custom_call.1} parent=11 // pred_fallthru
          _
      $region12: #{tpu_custom_call.1} parent=5 // pred_fallthru
        _
      %p253 = scmp.lt.s32.totalorder %s20, 8
      // Predicated region
      $region25: #{tpu_custom_call.1} parent=5 // pred_check
        %p254 = pneg %p253
      $region26: #{tpu_custom_call.1} parent=5 // pred_check_branch
        %256 = sbr.rel (%p254) target = $region28
      $region27: #{tpu_custom_call.1} parent=5 // pred_region
        // Predicated region
        $region29: #{tpu_custom_call.1} parent=27 // pred_check
          %p257 = pneg %p52
        $region30: #{tpu_custom_call.1} parent=27 // pred_check_branch
          %259 = sbr.rel (%p257) target = $region32
        $region31: #{tpu_custom_call.1} parent=27 // pred_region
          %s260 = sand.u32 %s20, 1
          %s261 = scalar_lea.sflag [#allocation4], %s260
          %s262 = sand.u32 %s42, 1
          %s263 = smul.addr %s262, 128
          %s264 = scalar_lea.vmem [#allocation3], %s263
          %s265 = smul.u32 16, %s27
          %s267 = ssub.s32 2048, 2048
          %268 = vsyncadd %s261, %s267
          %s269 = smul.addr %s265, 128
          %s270 = scalar_lea.hbm %s0, %s269
          %s271 = sshll.u32 %s264, 4
          %s272 = int_to_ptr.vmem [resolvable:$true] %s271
          %277 = dma.hbm_to_vmem [thread:$0]  %s270, 2048, %s272, %s261, 128, 128, 8
        $region32: #{tpu_custom_call.1} parent=27 // pred_fallthru
          _
        // Predicated region
        $region33: #{tpu_custom_call.1} parent=27 // pred_check
          %p278 = pneg %p141
        $region34: #{tpu_custom_call.1} parent=27 // pred_check_branch
          %280 = sbr.rel (%p278) target = $region36
        $region35: #{tpu_custom_call.1} parent=27 // pred_region
          %s281 = sand.u32 %s20, 1
          %s282 = scalar_lea.sflag [#allocation4], %s281
          %s283 = sand.u32 %s131, 1
          %s284 = smul.addr %s283, 128
          %s285 = scalar_lea.vmem [#allocation11], %s284
          %s286 = smul.u32 2, %s28
          %s288 = ssub.s32 2048, 2048
          %289 = vsyncadd %s282, %s288
          %s290 = smul.addr %s286, 64
          %s291 = scalar_lea.hbm %s4, %s290
          %s292 = sshll.u32 %s285, 4
          %s293 = int_to_ptr.vmem [resolvable:$true] %s292
          %298 = dma.hbm_to_vmem [thread:$0]  %s291, 2048, %s293, %s282, 256, 128, 8
        $region36: #{tpu_custom_call.1} parent=27 // pred_fallthru
          _
        // Predicated region
        $region37: #{tpu_custom_call.1} parent=27 // pred_check
          %p299 = pneg %p167
        $region38: #{tpu_custom_call.1} parent=27 // pred_check_branch
          %301 = sbr.rel (%p299) target = $region40
        $region39: #{tpu_custom_call.1} parent=27 // pred_region
          %s302 = sand.u32 %s20, 1
          %s303 = scalar_lea.sflag [#allocation4], %s302
          %s304 = sand.u32 %s157, 1
          %s305 = smul.addr %s304, 2
          %s306 = scalar_lea.vmem [#allocation12], %s305
          %s307 = smul.u32 2, %s28
          %s309 = ssub.s32 32, 32
          %310 = vsyncadd %s303, %s309
          %s311 = smul.addr %s307, 16
          %s312 = scalar_lea.hbm %s5, %s311
          %s314 = sshll.u32 %s306, 4
          %s315 = int_to_ptr.vmem [resolvable:$true] %s314
          %317 = dma.hbm_to_vmem [thread:$0]  %s312, 32, %s315, %s303
        $region40: #{tpu_custom_call.1} parent=27 // pred_fallthru
          _
      $region28: #{tpu_custom_call.1} parent=5 // pred_fallthru
        _
      %p318 = scmp.le.s32.totalorder 1, %s20
      %p319 = scmp.lt.s32.totalorder %s20, 9
      %p320 = pnand %p318, %p319
      %p321 = pneg %p320
      // Predicated region
      $region41: #{tpu_custom_call.1} parent=5 // pred_check
        _
      $region42: #{tpu_custom_call.1} parent=5 // pred_check_branch
        %323 = sbr.rel (%p320) target = $region44
      $region43: #{tpu_custom_call.1} parent=5 // pred_region
        %s324 = ssub.s32 %s20, 1
        %s325 = sand.u32 %s25, 1
        %s326 = scalar_lea.sflag [#allocation4], %s325
        %s327 = sand.u32 %s45, 1
        %s328 = smul.addr %s327, 128
        %s329 = scalar_lea.vmem [#allocation3], %s328
        // Predicated region
        $region45: #{tpu_custom_call.1} parent=43 // pred_check
          %p330 = pneg %p58
        $region46: #{tpu_custom_call.1} parent=43 // pred_check_branch
          %332 = sbr.rel (%p330) target = $region48
        $region47: #{tpu_custom_call.1} parent=43 // pred_region
          %333 = dma.done %s326, 2048
        $region48: #{tpu_custom_call.1} parent=43 // pred_fallthru
          _
        // Predicated region
        $region49: #{tpu_custom_call.1} parent=43 // pred_check
          %p334 = pneg %p79
        $region50: #{tpu_custom_call.1} parent=43 // pred_check_branch
          %336 = sbr.rel (%p334) target = $region52
        $region51: #{tpu_custom_call.1} parent=43 // pred_region
          %337 = dma.done [#allocation7], 4096
        $region52: #{tpu_custom_call.1} parent=43 // pred_fallthru
          _
        // Predicated region
        $region53: #{tpu_custom_call.1} parent=43 // pred_check
          %p338 = pneg %p100
        $region54: #{tpu_custom_call.1} parent=43 // pred_check_branch
          %340 = sbr.rel (%p338) target = $region56
        $region55: #{tpu_custom_call.1} parent=43 // pred_region
          %341 = dma.done [#allocation7], 1024
        $region56: #{tpu_custom_call.1} parent=43 // pred_fallthru
          _
        // Predicated region
        $region57: #{tpu_custom_call.1} parent=43 // pred_check
          %p342 = pneg %p121
        $region58: #{tpu_custom_call.1} parent=43 // pred_check_branch
          %344 = sbr.rel (%p342) target = $region60
        $region59: #{tpu_custom_call.1} parent=43 // pred_region
          %345 = dma.done [#allocation10], 16
        $region60: #{tpu_custom_call.1} parent=43 // pred_fallthru
          _
        %s346 = sand.u32 %s25, 1
        %s347 = scalar_lea.sflag [#allocation4], %s346
        %s348 = sand.u32 %s134, 1
        %s349 = smul.addr %s348, 128
        %s350 = scalar_lea.vmem [#allocation11], %s349
        // Predicated region
        $region61: #{tpu_custom_call.1} parent=43 // pred_check
          %p351 = pneg %p147
        $region62: #{tpu_custom_call.1} parent=43 // pred_check_branch
          %353 = sbr.rel (%p351) target = $region64
        $region63: #{tpu_custom_call.1} parent=43 // pred_region
          %354 = dma.done %s347, 2048
        $region64: #{tpu_custom_call.1} parent=43 // pred_fallthru
          _
        %s355 = sand.u32 %s25, 1
        %s356 = scalar_lea.sflag [#allocation4], %s355
        %s357 = sand.u32 %s160, 1
        %s358 = smul.addr %s357, 2
        %s359 = scalar_lea.vmem [#allocation12], %s358
        // Predicated region
        $region65: #{tpu_custom_call.1} parent=43 // pred_check
          %p360 = pneg %p173
        $region66: #{tpu_custom_call.1} parent=43 // pred_check_branch
          %362 = sbr.rel (%p360) target = $region68
        $region67: #{tpu_custom_call.1} parent=43 // pred_region
          %363 = dma.done %s356, 32
        $region68: #{tpu_custom_call.1} parent=43 // pred_fallthru
          _
        %s364 = sand.u32 %s25, 1
        %s365 = scalar_lea.sflag [#allocation4], %s364
        %s366 = sand.u32 %s45, 1
        %s367 = smul.addr %s366, 128
        %s368 = scalar_lea.vmem [#allocation3], %s367
        %p369 = pneg %p58
        %p370 = pneg %p55
        %p371 = pneg %p79
        %p372 = pneg %p76
        %p373 = pneg %p100
        %p374 = pneg %p97
        %p375 = pneg %p121
        %p376 = pneg %p118
        %s377 = sand.u32 %s25, 1
        %s378 = scalar_lea.sflag [#allocation4], %s377
        %s379 = sand.u32 %s134, 1
        %s380 = smul.addr %s379, 128
        %s381 = scalar_lea.vmem [#allocation11], %s380
        %p382 = pneg %p147
        %p383 = pneg %p144
        %s384 = sand.u32 %s25, 1
        %s385 = scalar_lea.sflag [#allocation4], %s384
        %s386 = sand.u32 %s160, 1
        %s387 = smul.addr %s386, 2
        %s388 = scalar_lea.vmem [#allocation12], %s387
        %p389 = pneg %p173
        %p390 = pneg %p170
        %p391 = pneg %p201
        %p392 = pneg %p198
        %s393 = sand.u32 %s188, 1
        %s394 = scalar_lea.sflag [#allocation5], %s393
        %s395 = sand.u32 %s188, 1
        %s396 = smul.addr %s395, 256
        %s397 = scalar_lea.vmem [#allocation13], %s396
        %s398 = smul.u32 16, %s29
        %s399 = smul.u32 2, %s30
        %s400 = smul.u32 2, %s30
        %s401 = smul.u32 16, %s29
        %s402 = smul.u32 2, %s30
        %p404 = scmp.eq.s32.totalorder %s30, 0
        // Predicated region
        $region69: #{tpu_custom_call.1} parent=43 // pred_check
          %p405 = pneg %p404
        $region70: #{tpu_custom_call.1} parent=43 // pred_check_branch
          %407 = sbr.rel (%p405) target = $region72
        $region71: #{tpu_custom_call.1} parent=43 // pred_region
          %v408 = vld [vmem:[%s329] sm:$0xff]
          %v409 = vld [vmem:[%s329 + $0x8] sm:$0xff]
          %v410 = vld [vmem:[%s329 + $0x10] sm:$0xff]
          %v411 = vld [vmem:[%s329 + $0x18] sm:$0xff]
          %v412 = vld [vmem:[%s329 + $0x20] sm:$0xff]
          %v413 = vld [vmem:[%s329 + $0x28] sm:$0xff]
          %v414 = vld [vmem:[%s329 + $0x30] sm:$0xff]
          %v415 = vld [vmem:[%s329 + $0x38] sm:$0xff]
          %v416 = vld [vmem:[%s329 + $0x40] sm:$0xff]
          %v417 = vld [vmem:[%s329 + $0x48] sm:$0xff]
          %v418 = vld [vmem:[%s329 + $0x50] sm:$0xff]
          %v419 = vld [vmem:[%s329 + $0x58] sm:$0xff]
          %v420 = vld [vmem:[%s329 + $0x60] sm:$0xff]
          %v421 = vld [vmem:[%s329 + $0x68] sm:$0xff]
          %v422 = vld [vmem:[%s329 + $0x70] sm:$0xff]
          %v423 = vld [vmem:[%s329 + $0x78] sm:$0xff]
          %v424 = vlaneseq
          %v425 = vand.u32 %v424, 127
          %v426 = vadd.s32 %v425, 128
          %v427 = vadd.s32 %v425, 256
          %v428 = vadd.s32 %v425, 384
          %429 = vset.pattern.permute.xlu0 0
          %430 = vperm.xlu0 %429, %v408
          %v431 = vpop.permute.xlu0 %430
          %432 = vset.pattern.permute.xlu0 0
          %433 = vperm.xlu0 %432, %v409
          %v434 = vpop.permute.xlu0 %433
          %435 = vset.pattern.permute.xlu0 0
          %436 = vperm.xlu0 %435, %v410
          %v437 = vpop.permute.xlu0 %436
          %438 = vset.pattern.permute.xlu0 0
          %439 = vperm.xlu0 %438, %v411
          %v440 = vpop.permute.xlu0 %439
          %441 = vset.pattern.permute.xlu0 0
          %442 = vperm.xlu0 %441, %v412
          %v443 = vpop.permute.xlu0 %442
          %444 = vset.pattern.permute.xlu0 0
          %445 = vperm.xlu0 %444, %v413
          %v446 = vpop.permute.xlu0 %445
          %447 = vset.pattern.permute.xlu0 0
          %448 = vperm.xlu0 %447, %v414
          %v449 = vpop.permute.xlu0 %448
          %450 = vset.pattern.permute.xlu0 0
          %451 = vperm.xlu0 %450, %v415
          %v452 = vpop.permute.xlu0 %451
          %453 = vset.pattern.permute.xlu0 0
          %454 = vperm.xlu0 %453, %v416
          %v455 = vpop.permute.xlu0 %454
          %456 = vset.pattern.permute.xlu0 0
          %457 = vperm.xlu0 %456, %v417
          %v458 = vpop.permute.xlu0 %457
          %459 = vset.pattern.permute.xlu0 0
          %460 = vperm.xlu0 %459, %v418
          %v461 = vpop.permute.xlu0 %460
          %462 = vset.pattern.permute.xlu0 0
          %463 = vperm.xlu0 %462, %v419
          %v464 = vpop.permute.xlu0 %463
          %465 = vset.pattern.permute.xlu0 0
          %466 = vperm.xlu0 %465, %v420
          %v467 = vpop.permute.xlu0 %466
          %468 = vset.pattern.permute.xlu0 0
          %469 = vperm.xlu0 %468, %v421
          %v470 = vpop.permute.xlu0 %469
          %471 = vset.pattern.permute.xlu0 0
          %472 = vperm.xlu0 %471, %v422
          %v473 = vpop.permute.xlu0 %472
          %474 = vset.pattern.permute.xlu0 0
          %475 = vperm.xlu0 %474, %v423
          %v476 = vpop.permute.xlu0 %475
          %vm477 = vcmp.eq.s32.totalorder %v431, %v425
          %vm478 = vcmp.eq.s32.totalorder %v431, %v426
          %vm479 = vcmp.eq.s32.totalorder %v431, %v427
          %vm480 = vcmp.eq.s32.totalorder %v431, %v428
          %vm481 = vcmp.eq.s32.totalorder %v434, %v425
          %vm482 = vcmp.eq.s32.totalorder %v434, %v426
          %vm483 = vcmp.eq.s32.totalorder %v434, %v427
          %vm484 = vcmp.eq.s32.totalorder %v434, %v428
          %vm485 = vcmp.eq.s32.totalorder %v437, %v425
          %vm486 = vcmp.eq.s32.totalorder %v437, %v426
          %vm487 = vcmp.eq.s32.totalorder %v437, %v427
          %vm488 = vcmp.eq.s32.totalorder %v437, %v428
          %vm489 = vcmp.eq.s32.totalorder %v440, %v425
          %vm490 = vcmp.eq.s32.totalorder %v440, %v426
          %vm491 = vcmp.eq.s32.totalorder %v440, %v427
          %vm492 = vcmp.eq.s32.totalorder %v440, %v428
          %vm493 = vcmp.eq.s32.totalorder %v443, %v425
          %vm494 = vcmp.eq.s32.totalorder %v443, %v426
          %vm495 = vcmp.eq.s32.totalorder %v443, %v427
          %vm496 = vcmp.eq.s32.totalorder %v443, %v428
          %vm497 = vcmp.eq.s32.totalorder %v446, %v425
          %vm498 = vcmp.eq.s32.totalorder %v446, %v426
          %vm499 = vcmp.eq.s32.totalorder %v446, %v427
          %vm500 = vcmp.eq.s32.totalorder %v446, %v428
          %vm501 = vcmp.eq.s32.totalorder %v449, %v425
          %vm502 = vcmp.eq.s32.totalorder %v449, %v426
          %vm503 = vcmp.eq.s32.totalorder %v449, %v427
          %vm504 = vcmp.eq.s32.totalorder %v449, %v428
          %vm505 = vcmp.eq.s32.totalorder %v452, %v425
          %vm506 = vcmp.eq.s32.totalorder %v452, %v426
          %vm507 = vcmp.eq.s32.totalorder %v452, %v427
          %vm508 = vcmp.eq.s32.totalorder %v452, %v428
          %vm509 = vcmp.eq.s32.totalorder %v455, %v425
          %vm510 = vcmp.eq.s32.totalorder %v455, %v426
          %vm511 = vcmp.eq.s32.totalorder %v455, %v427
          %vm512 = vcmp.eq.s32.totalorder %v455, %v428
          %vm513 = vcmp.eq.s32.totalorder %v458, %v425
          %vm514 = vcmp.eq.s32.totalorder %v458, %v426
          %vm515 = vcmp.eq.s32.totalorder %v458, %v427
          %vm516 = vcmp.eq.s32.totalorder %v458, %v428
          %vm517 = vcmp.eq.s32.totalorder %v461, %v425
          %vm518 = vcmp.eq.s32.totalorder %v461, %v426
          %vm519 = vcmp.eq.s32.totalorder %v461, %v427
          %vm520 = vcmp.eq.s32.totalorder %v461, %v428
          %vm521 = vcmp.eq.s32.totalorder %v464, %v425
          %vm522 = vcmp.eq.s32.totalorder %v464, %v426
          %vm523 = vcmp.eq.s32.totalorder %v464, %v427
          %vm524 = vcmp.eq.s32.totalorder %v464, %v428
          %vm525 = vcmp.eq.s32.totalorder %v467, %v425
          %vm526 = vcmp.eq.s32.totalorder %v467, %v426
          %vm527 = vcmp.eq.s32.totalorder %v467, %v427
          %vm528 = vcmp.eq.s32.totalorder %v467, %v428
          %vm529 = vcmp.eq.s32.totalorder %v470, %v425
          %vm530 = vcmp.eq.s32.totalorder %v470, %v426
          %vm531 = vcmp.eq.s32.totalorder %v470, %v427
          %vm532 = vcmp.eq.s32.totalorder %v470, %v428
          %vm533 = vcmp.eq.s32.totalorder %v473, %v425
          %vm534 = vcmp.eq.s32.totalorder %v473, %v426
          %vm535 = vcmp.eq.s32.totalorder %v473, %v427
          %vm536 = vcmp.eq.s32.totalorder %v473, %v428
          %vm537 = vcmp.eq.s32.totalorder %v476, %v425
          %vm538 = vcmp.eq.s32.totalorder %v476, %v426
          %vm539 = vcmp.eq.s32.totalorder %v476, %v427
          %vm540 = vcmp.eq.s32.totalorder %v476, %v428
          %v541 = vsel %vm477, 1, 0
          %v542 = vsel %vm478, 1, 0
          %v543 = vsel %vm479, 1, 0
          %v544 = vsel %vm480, 1, 0
          %v545 = vsel %vm481, 1, 0
          %v546 = vsel %vm482, 1, 0
          %v547 = vsel %vm483, 1, 0
          %v548 = vsel %vm484, 1, 0
          %v549 = vsel %vm485, 1, 0
          %v550 = vsel %vm486, 1, 0
          %v551 = vsel %vm487, 1, 0
          %v552 = vsel %vm488, 1, 0
          %v553 = vsel %vm489, 1, 0
          %v554 = vsel %vm490, 1, 0
          %v555 = vsel %vm491, 1, 0
          %v556 = vsel %vm492, 1, 0
          %v557 = vsel %vm493, 1, 0
          %v558 = vsel %vm494, 1, 0
          %v559 = vsel %vm495, 1, 0
          %v560 = vsel %vm496, 1, 0
          %v561 = vsel %vm497, 1, 0
          %v562 = vsel %vm498, 1, 0
          %v563 = vsel %vm499, 1, 0
          %v564 = vsel %vm500, 1, 0
          %v565 = vsel %vm501, 1, 0
          %v566 = vsel %vm502, 1, 0
          %v567 = vsel %vm503, 1, 0
          %v568 = vsel %vm504, 1, 0
          %v569 = vsel %vm505, 1, 0
          %v570 = vsel %vm506, 1, 0
          %v571 = vsel %vm507, 1, 0
          %v572 = vsel %vm508, 1, 0
          %v573 = vsel %vm509, 1, 0
          %v574 = vsel %vm510, 1, 0
          %v575 = vsel %vm511, 1, 0
          %v576 = vsel %vm512, 1, 0
          %v577 = vsel %vm513, 1, 0
          %v578 = vsel %vm514, 1, 0
          %v579 = vsel %vm515, 1, 0
          %v580 = vsel %vm516, 1, 0
          %v581 = vsel %vm517, 1, 0
          %v582 = vsel %vm518, 1, 0
          %v583 = vsel %vm519, 1, 0
          %v584 = vsel %vm520, 1, 0
          %v585 = vsel %vm521, 1, 0
          %v586 = vsel %vm522, 1, 0
          %v587 = vsel %vm523, 1, 0
          %v588 = vsel %vm524, 1, 0
          %v589 = vsel %vm525, 1, 0
          %v590 = vsel %vm526, 1, 0
          %v591 = vsel %vm527, 1, 0
          %v592 = vsel %vm528, 1, 0
          %v593 = vsel %vm529, 1, 0
          %v594 = vsel %vm530, 1, 0
          %v595 = vsel %vm531, 1, 0
          %v596 = vsel %vm532, 1, 0
          %v597 = vsel %vm533, 1, 0
          %v598 = vsel %vm534, 1, 0
          %v599 = vsel %vm535, 1, 0
          %v600 = vsel %vm536, 1, 0
          %v601 = vsel %vm537, 1, 0
          %v602 = vsel %vm538, 1, 0
          %v603 = vsel %vm539, 1, 0
          %v604 = vsel %vm540, 1, 0
          %v605 = vcvt.s32.f32 %v541
          %v606 = vcvt.s32.f32 %v542
          %v607 = vcvt.s32.f32 %v543
          %v608 = vcvt.s32.f32 %v544
          %v609 = vcvt.s32.f32 %v545
          %v610 = vcvt.s32.f32 %v546
          %v611 = vcvt.s32.f32 %v547
          %v612 = vcvt.s32.f32 %v548
          %v613 = vcvt.s32.f32 %v549
          %v614 = vcvt.s32.f32 %v550
          %v615 = vcvt.s32.f32 %v551
          %v616 = vcvt.s32.f32 %v552
          %v617 = vcvt.s32.f32 %v553
          %v618 = vcvt.s32.f32 %v554
          %v619 = vcvt.s32.f32 %v555
          %v620 = vcvt.s32.f32 %v556
          %v621 = vcvt.s32.f32 %v557
          %v622 = vcvt.s32.f32 %v558
          %v623 = vcvt.s32.f32 %v559
          %v624 = vcvt.s32.f32 %v560
          %v625 = vcvt.s32.f32 %v561
          %v626 = vcvt.s32.f32 %v562
          %v627 = vcvt.s32.f32 %v563
          %v628 = vcvt.s32.f32 %v564
          %v629 = vcvt.s32.f32 %v565
          %v630 = vcvt.s32.f32 %v566
          %v631 = vcvt.s32.f32 %v567
          %v632 = vcvt.s32.f32 %v568
          %v633 = vcvt.s32.f32 %v569
          %v634 = vcvt.s32.f32 %v570
          %v635 = vcvt.s32.f32 %v571
          %v636 = vcvt.s32.f32 %v572
          %v637 = vcvt.s32.f32 %v573
          %v638 = vcvt.s32.f32 %v574
          %v639 = vcvt.s32.f32 %v575
          %v640 = vcvt.s32.f32 %v576
          %v641 = vcvt.s32.f32 %v577
          %v642 = vcvt.s32.f32 %v578
          %v643 = vcvt.s32.f32 %v579
          %v644 = vcvt.s32.f32 %v580
          %v645 = vcvt.s32.f32 %v581
          %v646 = vcvt.s32.f32 %v582
          %v647 = vcvt.s32.f32 %v583
          %v648 = vcvt.s32.f32 %v584
          %v649 = vcvt.s32.f32 %v585
          %v650 = vcvt.s32.f32 %v586
          %v651 = vcvt.s32.f32 %v587
          %v652 = vcvt.s32.f32 %v588
          %v653 = vcvt.s32.f32 %v589
          %v654 = vcvt.s32.f32 %v590
          %v655 = vcvt.s32.f32 %v591
          %v656 = vcvt.s32.f32 %v592
          %v657 = vcvt.s32.f32 %v593
          %v658 = vcvt.s32.f32 %v594
          %v659 = vcvt.s32.f32 %v595
          %v660 = vcvt.s32.f32 %v596
          %v661 = vcvt.s32.f32 %v597
          %v662 = vcvt.s32.f32 %v598
          %v663 = vcvt.s32.f32 %v599
          %v664 = vcvt.s32.f32 %v600
          %v665 = vcvt.s32.f32 %v601
          %v666 = vcvt.s32.f32 %v602
          %v667 = vcvt.s32.f32 %v603
          %v668 = vcvt.s32.f32 %v604
          %v669 = vadd.f32 %v605, 0.0
          %v670 = vadd.f32 %v606, 0.0
          %v671 = vadd.f32 %v607, 0.0
          %v672 = vadd.f32 %v608, 0.0
          %v673 = vadd.f32 %v609, 0.0
          %v674 = vadd.f32 %v610, 0.0
          %v675 = vadd.f32 %v611, 0.0
          %v676 = vadd.f32 %v612, 0.0
          %v677 = vadd.f32 %v613, 0.0
          %v678 = vadd.f32 %v614, 0.0
          %v679 = vadd.f32 %v615, 0.0
          %v680 = vadd.f32 %v616, 0.0
          %v681 = vadd.f32 %v617, 0.0
          %v682 = vadd.f32 %v618, 0.0
          %v683 = vadd.f32 %v619, 0.0
          %v684 = vadd.f32 %v620, 0.0
          %v685 = vadd.f32 %v621, 0.0
          %v686 = vadd.f32 %v622, 0.0
          %v687 = vadd.f32 %v623, 0.0
          %v688 = vadd.f32 %v624, 0.0
          %v689 = vadd.f32 %v625, 0.0
          %v690 = vadd.f32 %v626, 0.0
          %v691 = vadd.f32 %v627, 0.0
          %v692 = vadd.f32 %v628, 0.0
          %v693 = vadd.f32 %v629, 0.0
          %v694 = vadd.f32 %v630, 0.0
          %v695 = vadd.f32 %v631, 0.0
          %v696 = vadd.f32 %v632, 0.0
          %v697 = vadd.f32 %v633, 0.0
          %v698 = vadd.f32 %v634, 0.0
          %v699 = vadd.f32 %v635, 0.0
          %v700 = vadd.f32 %v636, 0.0
          %v701 = vadd.f32 %v637, 0.0
          %v702 = vadd.f32 %v638, 0.0
          %v703 = vadd.f32 %v639, 0.0
          %v704 = vadd.f32 %v640, 0.0
          %v705 = vadd.f32 %v641, 0.0
          %v706 = vadd.f32 %v642, 0.0
          %v707 = vadd.f32 %v643, 0.0
          %v708 = vadd.f32 %v644, 0.0
          %v709 = vadd.f32 %v645, 0.0
          %v710 = vadd.f32 %v646, 0.0
          %v711 = vadd.f32 %v647, 0.0
          %v712 = vadd.f32 %v648, 0.0
          %v713 = vadd.f32 %v649, 0.0
          %v714 = vadd.f32 %v650, 0.0
          %v715 = vadd.f32 %v651, 0.0
          %v716 = vadd.f32 %v652, 0.0
          %v717 = vadd.f32 %v653, 0.0
          %v718 = vadd.f32 %v654, 0.0
          %v719 = vadd.f32 %v655, 0.0
          %v720 = vadd.f32 %v656, 0.0
          %v721 = vadd.f32 %v657, 0.0
          %v722 = vadd.f32 %v658, 0.0
          %v723 = vadd.f32 %v659, 0.0
          %v724 = vadd.f32 %v660, 0.0
          %v725 = vadd.f32 %v661, 0.0
          %v726 = vadd.f32 %v662, 0.0
          %v727 = vadd.f32 %v663, 0.0
          %v728 = vadd.f32 %v664, 0.0
          %v729 = vadd.f32 %v665, 0.0
          %v730 = vadd.f32 %v666, 0.0
          %v731 = vadd.f32 %v667, 0.0
          %v732 = vadd.f32 %v668, 0.0
          %733 = vset.pattern.permute.xlu0 1
          %734 = vperm.xlu0 %733, %v408
          %v735 = vpop.permute.xlu0 %734
          %736 = vset.pattern.permute.xlu0 1
          %737 = vperm.xlu0 %736, %v409
          %v738 = vpop.permute.xlu0 %737
          %739 = vset.pattern.permute.xlu0 1
          %740 = vperm.xlu0 %739, %v410
          %v741 = vpop.permute.xlu0 %740
          %742 = vset.pattern.permute.xlu0 1
          %743 = vperm.xlu0 %742, %v411
          %v744 = vpop.permute.xlu0 %743
          %745 = vset.pattern.permute.xlu0 1
          %746 = vperm.xlu0 %745, %v412
          %v747 = vpop.permute.xlu0 %746
          %748 = vset.pattern.permute.xlu0 1
          %749 = vperm.xlu0 %748, %v413
          %v750 = vpop.permute.xlu0 %749
          %751 = vset.pattern.permute.xlu0 1
          %752 = vperm.xlu0 %751, %v414
          %v753 = vpop.permute.xlu0 %752
          %754 = vset.pattern.permute.xlu0 1
          %755 = vperm.xlu0 %754, %v415
          %v756 = vpop.permute.xlu0 %755
          %757 = vset.pattern.permute.xlu0 1
          %758 = vperm.xlu0 %757, %v416
          %v759 = vpop.permute.xlu0 %758
          %760 = vset.pattern.permute.xlu0 1
          %761 = vperm.xlu0 %760, %v417
          %v762 = vpop.permute.xlu0 %761
          %763 = vset.pattern.permute.xlu0 1
          %764 = vperm.xlu0 %763, %v418
          %v765 = vpop.permute.xlu0 %764
          %766 = vset.pattern.permute.xlu0 1
          %767 = vperm.xlu0 %766, %v419
          %v768 = vpop.permute.xlu0 %767
          %769 = vset.pattern.permute.xlu0 1
          %770 = vperm.xlu0 %769, %v420
          %v771 = vpop.permute.xlu0 %770
          %772 = vset.pattern.permute.xlu0 1
          %773 = vperm.xlu0 %772, %v421
          %v774 = vpop.permute.xlu0 %773
          %775 = vset.pattern.permute.xlu0 1
          %776 = vperm.xlu0 %775, %v422
          %v777 = vpop.permute.xlu0 %776
          %778 = vset.pattern.permute.xlu0 1
          %779 = vperm.xlu0 %778, %v423
          %v780 = vpop.permute.xlu0 %779
          %vm781 = vcmp.eq.s32.totalorder %v735, %v425
          %vm782 = vcmp.eq.s32.totalorder %v735, %v426
          %vm783 = vcmp.eq.s32.totalorder %v735, %v427
          %vm784 = vcmp.eq.s32.totalorder %v735, %v428
          %vm785 = vcmp.eq.s32.totalorder %v738, %v425
          %vm786 = vcmp.eq.s32.totalorder %v738, %v426
          %vm787 = vcmp.eq.s32.totalorder %v738, %v427
          %vm788 = vcmp.eq.s32.totalorder %v738, %v428
          %vm789 = vcmp.eq.s32.totalorder %v741, %v425
          %vm790 = vcmp.eq.s32.totalorder %v741, %v426
          %vm791 = vcmp.eq.s32.totalorder %v741, %v427
          %vm792 = vcmp.eq.s32.totalorder %v741, %v428
          %vm793 = vcmp.eq.s32.totalorder %v744, %v425
          %vm794 = vcmp.eq.s32.totalorder %v744, %v426
          %vm795 = vcmp.eq.s32.totalorder %v744, %v427
          %vm796 = vcmp.eq.s32.totalorder %v744, %v428
          %vm797 = vcmp.eq.s32.totalorder %v747, %v425
          %vm798 = vcmp.eq.s32.totalorder %v747, %v426
          %vm799 = vcmp.eq.s32.totalorder %v747, %v427
          %vm800 = vcmp.eq.s32.totalorder %v747, %v428
          %vm801 = vcmp.eq.s32.totalorder %v750, %v425
          %vm802 = vcmp.eq.s32.totalorder %v750, %v426
          %vm803 = vcmp.eq.s32.totalorder %v750, %v427
          %vm804 = vcmp.eq.s32.totalorder %v750, %v428
          %vm805 = vcmp.eq.s32.totalorder %v753, %v425
          %vm806 = vcmp.eq.s32.totalorder %v753, %v426
          %vm807 = vcmp.eq.s32.totalorder %v753, %v427
          %vm808 = vcmp.eq.s32.totalorder %v753, %v428
          %vm809 = vcmp.eq.s32.totalorder %v756, %v425
          %vm810 = vcmp.eq.s32.totalorder %v756, %v426
          %vm811 = vcmp.eq.s32.totalorder %v756, %v427
          %vm812 = vcmp.eq.s32.totalorder %v756, %v428
          %vm813 = vcmp.eq.s32.totalorder %v759, %v425
          %vm814 = vcmp.eq.s32.totalorder %v759, %v426
          %vm815 = vcmp.eq.s32.totalorder %v759, %v427
          %vm816 = vcmp.eq.s32.totalorder %v759, %v428
          %vm817 = vcmp.eq.s32.totalorder %v762, %v425
          %vm818 = vcmp.eq.s32.totalorder %v762, %v426
          %vm819 = vcmp.eq.s32.totalorder %v762, %v427
          %vm820 = vcmp.eq.s32.totalorder %v762, %v428
          %vm821 = vcmp.eq.s32.totalorder %v765, %v425
          %vm822 = vcmp.eq.s32.totalorder %v765, %v426
          %vm823 = vcmp.eq.s32.totalorder %v765, %v427
          %vm824 = vcmp.eq.s32.totalorder %v765, %v428
          %vm825 = vcmp.eq.s32.totalorder %v768, %v425
          %vm826 = vcmp.eq.s32.totalorder %v768, %v426
          %vm827 = vcmp.eq.s32.totalorder %v768, %v427
          %vm828 = vcmp.eq.s32.totalorder %v768, %v428
          %vm829 = vcmp.eq.s32.totalorder %v771, %v425
          %vm830 = vcmp.eq.s32.totalorder %v771, %v426
          %vm831 = vcmp.eq.s32.totalorder %v771, %v427
          %vm832 = vcmp.eq.s32.totalorder %v771, %v428
          %vm833 = vcmp.eq.s32.totalorder %v774, %v425
          %vm834 = vcmp.eq.s32.totalorder %v774, %v426
          %vm835 = vcmp.eq.s32.totalorder %v774, %v427
          %vm836 = vcmp.eq.s32.totalorder %v774, %v428
          %vm837 = vcmp.eq.s32.totalorder %v777, %v425
          %vm838 = vcmp.eq.s32.totalorder %v777, %v426
          %vm839 = vcmp.eq.s32.totalorder %v777, %v427
          %vm840 = vcmp.eq.s32.totalorder %v777, %v428
          %vm841 = vcmp.eq.s32.totalorder %v780, %v425
          %vm842 = vcmp.eq.s32.totalorder %v780, %v426
          %vm843 = vcmp.eq.s32.totalorder %v780, %v427
          %vm844 = vcmp.eq.s32.totalorder %v780, %v428
          %v845 = vsel %vm781, 1, 0
          %v846 = vsel %vm782, 1, 0
          %v847 = vsel %vm783, 1, 0
          %v848 = vsel %vm784, 1, 0
          %v849 = vsel %vm785, 1, 0
          %v850 = vsel %vm786, 1, 0
          %v851 = vsel %vm787, 1, 0
          %v852 = vsel %vm788, 1, 0
          %v853 = vsel %vm789, 1, 0
          %v854 = vsel %vm790, 1, 0
          %v855 = vsel %vm791, 1, 0
          %v856 = vsel %vm792, 1, 0
          %v857 = vsel %vm793, 1, 0
          %v858 = vsel %vm794, 1, 0
          %v859 = vsel %vm795, 1, 0
          %v860 = vsel %vm796, 1, 0
          %v861 = vsel %vm797, 1, 0
          %v862 = vsel %vm798, 1, 0
          %v863 = vsel %vm799, 1, 0
          %v864 = vsel %vm800, 1, 0
          %v865 = vsel %vm801, 1, 0
          %v866 = vsel %vm802, 1, 0
          %v867 = vsel %vm803, 1, 0
          %v868 = vsel %vm804, 1, 0
          %v869 = vsel %vm805, 1, 0
          %v870 = vsel %vm806, 1, 0
          %v871 = vsel %vm807, 1, 0
          %v872 = vsel %vm808, 1, 0
          %v873 = vsel %vm809, 1, 0
          %v874 = vsel %vm810, 1, 0
          %v875 = vsel %vm811, 1, 0
          %v876 = vsel %vm812, 1, 0
          %v877 = vsel %vm813, 1, 0
          %v878 = vsel %vm814, 1, 0
          %v879 = vsel %vm815, 1, 0
          %v880 = vsel %vm816, 1, 0
          %v881 = vsel %vm817, 1, 0
          %v882 = vsel %vm818, 1, 0
          %v883 = vsel %vm819, 1, 0
          %v884 = vsel %vm820, 1, 0
          %v885 = vsel %vm821, 1, 0
          %v886 = vsel %vm822, 1, 0
          %v887 = vsel %vm823, 1, 0
          %v888 = vsel %vm824, 1, 0
          %v889 = vsel %vm825, 1, 0
          %v890 = vsel %vm826, 1, 0
          %v891 = vsel %vm827, 1, 0
          %v892 = vsel %vm828, 1, 0
          %v893 = vsel %vm829, 1, 0
          %v894 = vsel %vm830, 1, 0
          %v895 = vsel %vm831, 1, 0
          %v896 = vsel %vm832, 1, 0
          %v897 = vsel %vm833, 1, 0
          %v898 = vsel %vm834, 1, 0
          %v899 = vsel %vm835, 1, 0
          %v900 = vsel %vm836, 1, 0
          %v901 = vsel %vm837, 1, 0
          %v902 = vsel %vm838, 1, 0
          %v903 = vsel %vm839, 1, 0
          %v904 = vsel %vm840, 1, 0
          %v905 = vsel %vm841, 1, 0
          %v906 = vsel %vm842, 1, 0
          %v907 = vsel %vm843, 1, 0
          %v908 = vsel %vm844, 1, 0
          %v909 = vcvt.s32.f32 %v845
          %v910 = vcvt.s32.f32 %v846
          %v911 = vcvt.s32.f32 %v847
          %v912 = vcvt.s32.f32 %v848
          %v913 = vcvt.s32.f32 %v849
          %v914 = vcvt.s32.f32 %v850
          %v915 = vcvt.s32.f32 %v851
          %v916 = vcvt.s32.f32 %v852
          %v917 = vcvt.s32.f32 %v853
          %v918 = vcvt.s32.f32 %v854
          %v919 = vcvt.s32.f32 %v855
          %v920 = vcvt.s32.f32 %v856
          %v921 = vcvt.s32.f32 %v857
          %v922 = vcvt.s32.f32 %v858
          %v923 = vcvt.s32.f32 %v859
          %v924 = vcvt.s32.f32 %v860
          %v925 = vcvt.s32.f32 %v861
          %v926 = vcvt.s32.f32 %v862
          %v927 = vcvt.s32.f32 %v863
          %v928 = vcvt.s32.f32 %v864
          %v929 = vcvt.s32.f32 %v865
          %v930 = vcvt.s32.f32 %v866
          %v931 = vcvt.s32.f32 %v867
          %v932 = vcvt.s32.f32 %v868
          %v933 = vcvt.s32.f32 %v869
          %v934 = vcvt.s32.f32 %v870
          %v935 = vcvt.s32.f32 %v871
          %v936 = vcvt.s32.f32 %v872
          %v937 = vcvt.s32.f32 %v873
          %v938 = vcvt.s32.f32 %v874
          %v939 = vcvt.s32.f32 %v875
          %v940 = vcvt.s32.f32 %v876
          %v941 = vcvt.s32.f32 %v877
          %v942 = vcvt.s32.f32 %v878
          %v943 = vcvt.s32.f32 %v879
          %v944 = vcvt.s32.f32 %v880
          %v945 = vcvt.s32.f32 %v881
          %v946 = vcvt.s32.f32 %v882
          %v947 = vcvt.s32.f32 %v883
          %v948 = vcvt.s32.f32 %v884
          %v949 = vcvt.s32.f32 %v885
          %v950 = vcvt.s32.f32 %v886
          %v951 = vcvt.s32.f32 %v887
          %v952 = vcvt.s32.f32 %v888
          %v953 = vcvt.s32.f32 %v889
          %v954 = vcvt.s32.f32 %v890
          %v955 = vcvt.s32.f32 %v891
          %v956 = vcvt.s32.f32 %v892
          %v957 = vcvt.s32.f32 %v893
          %v958 = vcvt.s32.f32 %v894
          %v959 = vcvt.s32.f32 %v895
          %v960 = vcvt.s32.f32 %v896
          %v961 = vcvt.s32.f32 %v897
          %v962 = vcvt.s32.f32 %v898
          %v963 = vcvt.s32.f32 %v899
          %v964 = vcvt.s32.f32 %v900
          %v965 = vcvt.s32.f32 %v901
          %v966 = vcvt.s32.f32 %v902
          %v967 = vcvt.s32.f32 %v903
          %v968 = vcvt.s32.f32 %v904
          %v969 = vcvt.s32.f32 %v905
          %v970 = vcvt.s32.f32 %v906
          %v971 = vcvt.s32.f32 %v907
          %v972 = vcvt.s32.f32 %v908
          %v973 = vadd.f32 %v669, %v909
          %v974 = vadd.f32 %v670, %v910
          %v975 = vadd.f32 %v671, %v911
          %v976 = vadd.f32 %v672, %v912
          %v977 = vadd.f32 %v673, %v913
          %v978 = vadd.f32 %v674, %v914
          %v979 = vadd.f32 %v675, %v915
          %v980 = vadd.f32 %v676, %v916
          %v981 = vadd.f32 %v677, %v917
          %v982 = vadd.f32 %v678, %v918
          %v983 = vadd.f32 %v679, %v919
          %v984 = vadd.f32 %v680, %v920
          %v985 = vadd.f32 %v681, %v921
          %v986 = vadd.f32 %v682, %v922
          %v987 = vadd.f32 %v683, %v923
          %v988 = vadd.f32 %v684, %v924
          %v989 = vadd.f32 %v685, %v925
          %v990 = vadd.f32 %v686, %v926
          %v991 = vadd.f32 %v687, %v927
          %v992 = vadd.f32 %v688, %v928
          %v993 = vadd.f32 %v689, %v929
          %v994 = vadd.f32 %v690, %v930
          %v995 = vadd.f32 %v691, %v931
          %v996 = vadd.f32 %v692, %v932
          %v997 = vadd.f32 %v693, %v933
          %v998 = vadd.f32 %v694, %v934
          %v999 = vadd.f32 %v695, %v935
          %v1000 = vadd.f32 %v696, %v936
          %v1001 = vadd.f32 %v697, %v937
          %v1002 = vadd.f32 %v698, %v938
          %v1003 = vadd.f32 %v699, %v939
          %v1004 = vadd.f32 %v700, %v940
          %v1005 = vadd.f32 %v701, %v941
          %v1006 = vadd.f32 %v702, %v942
          %v1007 = vadd.f32 %v703, %v943
          %v1008 = vadd.f32 %v704, %v944
          %v1009 = vadd.f32 %v705, %v945
          %v1010 = vadd.f32 %v706, %v946
          %v1011 = vadd.f32 %v707, %v947
          %v1012 = vadd.f32 %v708, %v948
          %v1013 = vadd.f32 %v709, %v949
          %v1014 = vadd.f32 %v710, %v950
          %v1015 = vadd.f32 %v711, %v951
          %v1016 = vadd.f32 %v712, %v952
          %v1017 = vadd.f32 %v713, %v953
          %v1018 = vadd.f32 %v714, %v954
          %v1019 = vadd.f32 %v715, %v955
          %v1020 = vadd.f32 %v716, %v956
          %v1021 = vadd.f32 %v717, %v957
          %v1022 = vadd.f32 %v718, %v958
          %v1023 = vadd.f32 %v719, %v959
          %v1024 = vadd.f32 %v720, %v960
          %v1025 = vadd.f32 %v721, %v961
          %v1026 = vadd.f32 %v722, %v962
          %v1027 = vadd.f32 %v723, %v963
          %v1028 = vadd.f32 %v724, %v964
          %v1029 = vadd.f32 %v725, %v965
          %v1030 = vadd.f32 %v726, %v966
          %v1031 = vadd.f32 %v727, %v967
          %v1032 = vadd.f32 %v728, %v968
          %v1033 = vadd.f32 %v729, %v969
          %v1034 = vadd.f32 %v730, %v970
          %v1035 = vadd.f32 %v731, %v971
          %v1036 = vadd.f32 %v732, %v972
          %1037 = vset.pattern.permute.xlu0 2
          %1038 = vperm.xlu0 %1037, %v408
          %v1039 = vpop.permute.xlu0 %1038
          %1040 = vset.pattern.permute.xlu0 2
          %1041 = vperm.xlu0 %1040, %v409
          %v1042 = vpop.permute.xlu0 %1041
          %1043 = vset.pattern.permute.xlu0 2
          %1044 = vperm.xlu0 %1043, %v410
          %v1045 = vpop.permute.xlu0 %1044
          %1046 = vset.pattern.permute.xlu0 2
          %1047 = vperm.xlu0 %1046, %v411
          %v1048 = vpop.permute.xlu0 %1047
          %1049 = vset.pattern.permute.xlu0 2
          %1050 = vperm.xlu0 %1049, %v412
          %v1051 = vpop.permute.xlu0 %1050
          %1052 = vset.pattern.permute.xlu0 2
          %1053 = vperm.xlu0 %1052, %v413
          %v1054 = vpop.permute.xlu0 %1053
          %1055 = vset.pattern.permute.xlu0 2
          %1056 = vperm.xlu0 %1055, %v414
          %v1057 = vpop.permute.xlu0 %1056
          %1058 = vset.pattern.permute.xlu0 2
          %1059 = vperm.xlu0 %1058, %v415
          %v1060 = vpop.permute.xlu0 %1059
          %1061 = vset.pattern.permute.xlu0 2
          %1062 = vperm.xlu0 %1061, %v416
          %v1063 = vpop.permute.xlu0 %1062
          %1064 = vset.pattern.permute.xlu0 2
          %1065 = vperm.xlu0 %1064, %v417
          %v1066 = vpop.permute.xlu0 %1065
          %1067 = vset.pattern.permute.xlu0 2
          %1068 = vperm.xlu0 %1067, %v418
          %v1069 = vpop.permute.xlu0 %1068
          %1070 = vset.pattern.permute.xlu0 2
          %1071 = vperm.xlu0 %1070, %v419
          %v1072 = vpop.permute.xlu0 %1071
          %1073 = vset.pattern.permute.xlu0 2
          %1074 = vperm.xlu0 %1073, %v420
          %v1075 = vpop.permute.xlu0 %1074
          %1076 = vset.pattern.permute.xlu0 2
          %1077 = vperm.xlu0 %1076, %v421
          %v1078 = vpop.permute.xlu0 %1077
          %1079 = vset.pattern.permute.xlu0 2
          %1080 = vperm.xlu0 %1079, %v422
          %v1081 = vpop.permute.xlu0 %1080
          %1082 = vset.pattern.permute.xlu0 2
          %1083 = vperm.xlu0 %1082, %v423
          %v1084 = vpop.permute.xlu0 %1083
          %vm1085 = vcmp.eq.s32.totalorder %v1039, %v425
          %vm1086 = vcmp.eq.s32.totalorder %v1039, %v426
          %vm1087 = vcmp.eq.s32.totalorder %v1039, %v427
          %vm1088 = vcmp.eq.s32.totalorder %v1039, %v428
          %vm1089 = vcmp.eq.s32.totalorder %v1042, %v425
          %vm1090 = vcmp.eq.s32.totalorder %v1042, %v426
          %vm1091 = vcmp.eq.s32.totalorder %v1042, %v427
          %vm1092 = vcmp.eq.s32.totalorder %v1042, %v428
          %vm1093 = vcmp.eq.s32.totalorder %v1045, %v425
          %vm1094 = vcmp.eq.s32.totalorder %v1045, %v426
          %vm1095 = vcmp.eq.s32.totalorder %v1045, %v427
          %vm1096 = vcmp.eq.s32.totalorder %v1045, %v428
          %vm1097 = vcmp.eq.s32.totalorder %v1048, %v425
          %vm1098 = vcmp.eq.s32.totalorder %v1048, %v426
          %vm1099 = vcmp.eq.s32.totalorder %v1048, %v427
          %vm1100 = vcmp.eq.s32.totalorder %v1048, %v428
          %vm1101 = vcmp.eq.s32.totalorder %v1051, %v425
          %vm1102 = vcmp.eq.s32.totalorder %v1051, %v426
          %vm1103 = vcmp.eq.s32.totalorder %v1051, %v427
          %vm1104 = vcmp.eq.s32.totalorder %v1051, %v428
          %vm1105 = vcmp.eq.s32.totalorder %v1054, %v425
          %vm1106 = vcmp.eq.s32.totalorder %v1054, %v426
          %vm1107 = vcmp.eq.s32.totalorder %v1054, %v427
          %vm1108 = vcmp.eq.s32.totalorder %v1054, %v428
          %vm1109 = vcmp.eq.s32.totalorder %v1057, %v425
          %vm1110 = vcmp.eq.s32.totalorder %v1057, %v426
          %vm1111 = vcmp.eq.s32.totalorder %v1057, %v427
          %vm1112 = vcmp.eq.s32.totalorder %v1057, %v428
          %vm1113 = vcmp.eq.s32.totalorder %v1060, %v425
          %vm1114 = vcmp.eq.s32.totalorder %v1060, %v426
          %vm1115 = vcmp.eq.s32.totalorder %v1060, %v427
          %vm1116 = vcmp.eq.s32.totalorder %v1060, %v428
          %vm1117 = vcmp.eq.s32.totalorder %v1063, %v425
          %vm1118 = vcmp.eq.s32.totalorder %v1063, %v426
          %vm1119 = vcmp.eq.s32.totalorder %v1063, %v427
          %vm1120 = vcmp.eq.s32.totalorder %v1063, %v428
          %vm1121 = vcmp.eq.s32.totalorder %v1066, %v425
          %vm1122 = vcmp.eq.s32.totalorder %v1066, %v426
          %vm1123 = vcmp.eq.s32.totalorder %v1066, %v427
          %vm1124 = vcmp.eq.s32.totalorder %v1066, %v428
          %vm1125 = vcmp.eq.s32.totalorder %v1069, %v425
          %vm1126 = vcmp.eq.s32.totalorder %v1069, %v426
          %vm1127 = vcmp.eq.s32.totalorder %v1069, %v427
          %vm1128 = vcmp.eq.s32.totalorder %v1069, %v428
          %vm1129 = vcmp.eq.s32.totalorder %v1072, %v425
          %vm1130 = vcmp.eq.s32.totalorder %v1072, %v426
          %vm1131 = vcmp.eq.s32.totalorder %v1072, %v427
          %vm1132 = vcmp.eq.s32.totalorder %v1072, %v428
          %vm1133 = vcmp.eq.s32.totalorder %v1075, %v425
          %vm1134 = vcmp.eq.s32.totalorder %v1075, %v426
          %vm1135 = vcmp.eq.s32.totalorder %v1075, %v427
          %vm1136 = vcmp.eq.s32.totalorder %v1075, %v428
          %vm1137 = vcmp.eq.s32.totalorder %v1078, %v425
          %vm1138 = vcmp.eq.s32.totalorder %v1078, %v426
          %vm1139 = vcmp.eq.s32.totalorder %v1078, %v427
          %vm1140 = vcmp.eq.s32.totalorder %v1078, %v428
          %vm1141 = vcmp.eq.s32.totalorder %v1081, %v425
          %vm1142 = vcmp.eq.s32.totalorder %v1081, %v426
          %vm1143 = vcmp.eq.s32.totalorder %v1081, %v427
          %vm1144 = vcmp.eq.s32.totalorder %v1081, %v428
          %vm1145 = vcmp.eq.s32.totalorder %v1084, %v425
          %vm1146 = vcmp.eq.s32.totalorder %v1084, %v426
          %vm1147 = vcmp.eq.s32.totalorder %v1084, %v427
          %vm1148 = vcmp.eq.s32.totalorder %v1084, %v428
          %v1149 = vsel %vm1085, 1, 0
          %v1150 = vsel %vm1086, 1, 0
          %v1151 = vsel %vm1087, 1, 0
          %v1152 = vsel %vm1088, 1, 0
          %v1153 = vsel %vm1089, 1, 0
          %v1154 = vsel %vm1090, 1, 0
          %v1155 = vsel %vm1091, 1, 0
          %v1156 = vsel %vm1092, 1, 0
          %v1157 = vsel %vm1093, 1, 0
          %v1158 = vsel %vm1094, 1, 0
          %v1159 = vsel %vm1095, 1, 0
          %v1160 = vsel %vm1096, 1, 0
          %v1161 = vsel %vm1097, 1, 0
          %v1162 = vsel %vm1098, 1, 0
          %v1163 = vsel %vm1099, 1, 0
          %v1164 = vsel %vm1100, 1, 0
          %v1165 = vsel %vm1101, 1, 0
          %v1166 = vsel %vm1102, 1, 0
          %v1167 = vsel %vm1103, 1, 0
          %v1168 = vsel %vm1104, 1, 0
          %v1169 = vsel %vm1105, 1, 0
          %v1170 = vsel %vm1106, 1, 0
          %v1171 = vsel %vm1107, 1, 0
          %v1172 = vsel %vm1108, 1, 0
          %v1173 = vsel %vm1109, 1, 0
          %v1174 = vsel %vm1110, 1, 0
          %v1175 = vsel %vm1111, 1, 0
          %v1176 = vsel %vm1112, 1, 0
          %v1177 = vsel %vm1113, 1, 0
          %v1178 = vsel %vm1114, 1, 0
          %v1179 = vsel %vm1115, 1, 0
          %v1180 = vsel %vm1116, 1, 0
          %v1181 = vsel %vm1117, 1, 0
          %v1182 = vsel %vm1118, 1, 0
          %v1183 = vsel %vm1119, 1, 0
          %v1184 = vsel %vm1120, 1, 0
          %v1185 = vsel %vm1121, 1, 0
          %v1186 = vsel %vm1122, 1, 0
          %v1187 = vsel %vm1123, 1, 0
          %v1188 = vsel %vm1124, 1, 0
          %v1189 = vsel %vm1125, 1, 0
          %v1190 = vsel %vm1126, 1, 0
          %v1191 = vsel %vm1127, 1, 0
          %v1192 = vsel %vm1128, 1, 0
          %v1193 = vsel %vm1129, 1, 0
          %v1194 = vsel %vm1130, 1, 0
          %v1195 = vsel %vm1131, 1, 0
          %v1196 = vsel %vm1132, 1, 0
          %v1197 = vsel %vm1133, 1, 0
          %v1198 = vsel %vm1134, 1, 0
          %v1199 = vsel %vm1135, 1, 0
          %v1200 = vsel %vm1136, 1, 0
          %v1201 = vsel %vm1137, 1, 0
          %v1202 = vsel %vm1138, 1, 0
          %v1203 = vsel %vm1139, 1, 0
          %v1204 = vsel %vm1140, 1, 0
          %v1205 = vsel %vm1141, 1, 0
          %v1206 = vsel %vm1142, 1, 0
          %v1207 = vsel %vm1143, 1, 0
          %v1208 = vsel %vm1144, 1, 0
          %v1209 = vsel %vm1145, 1, 0
          %v1210 = vsel %vm1146, 1, 0
          %v1211 = vsel %vm1147, 1, 0
          %v1212 = vsel %vm1148, 1, 0
          %v1213 = vcvt.s32.f32 %v1149
          %v1214 = vcvt.s32.f32 %v1150
          %v1215 = vcvt.s32.f32 %v1151
          %v1216 = vcvt.s32.f32 %v1152
          %v1217 = vcvt.s32.f32 %v1153
          %v1218 = vcvt.s32.f32 %v1154
          %v1219 = vcvt.s32.f32 %v1155
          %v1220 = vcvt.s32.f32 %v1156
          %v1221 = vcvt.s32.f32 %v1157
          %v1222 = vcvt.s32.f32 %v1158
          %v1223 = vcvt.s32.f32 %v1159
          %v1224 = vcvt.s32.f32 %v1160
          %v1225 = vcvt.s32.f32 %v1161
          %v1226 = vcvt.s32.f32 %v1162
          %v1227 = vcvt.s32.f32 %v1163
          %v1228 = vcvt.s32.f32 %v1164
          %v1229 = vcvt.s32.f32 %v1165
          %v1230 = vcvt.s32.f32 %v1166
          %v1231 = vcvt.s32.f32 %v1167
          %v1232 = vcvt.s32.f32 %v1168
          %v1233 = vcvt.s32.f32 %v1169
          %v1234 = vcvt.s32.f32 %v1170
          %v1235 = vcvt.s32.f32 %v1171
          %v1236 = vcvt.s32.f32 %v1172
          %v1237 = vcvt.s32.f32 %v1173
          %v1238 = vcvt.s32.f32 %v1174
          %v1239 = vcvt.s32.f32 %v1175
          %v1240 = vcvt.s32.f32 %v1176
          %v1241 = vcvt.s32.f32 %v1177
          %v1242 = vcvt.s32.f32 %v1178
          %v1243 = vcvt.s32.f32 %v1179
          %v1244 = vcvt.s32.f32 %v1180
          %v1245 = vcvt.s32.f32 %v1181
          %v1246 = vcvt.s32.f32 %v1182
          %v1247 = vcvt.s32.f32 %v1183
          %v1248 = vcvt.s32.f32 %v1184
          %v1249 = vcvt.s32.f32 %v1185
          %v1250 = vcvt.s32.f32 %v1186
          %v1251 = vcvt.s32.f32 %v1187
          %v1252 = vcvt.s32.f32 %v1188
          %v1253 = vcvt.s32.f32 %v1189
          %v1254 = vcvt.s32.f32 %v1190
          %v1255 = vcvt.s32.f32 %v1191
          %v1256 = vcvt.s32.f32 %v1192
          %v1257 = vcvt.s32.f32 %v1193
          %v1258 = vcvt.s32.f32 %v1194
          %v1259 = vcvt.s32.f32 %v1195
          %v1260 = vcvt.s32.f32 %v1196
          %v1261 = vcvt.s32.f32 %v1197
          %v1262 = vcvt.s32.f32 %v1198
          %v1263 = vcvt.s32.f32 %v1199
          %v1264 = vcvt.s32.f32 %v1200
          %v1265 = vcvt.s32.f32 %v1201
          %v1266 = vcvt.s32.f32 %v1202
          %v1267 = vcvt.s32.f32 %v1203
          %v1268 = vcvt.s32.f32 %v1204
          %v1269 = vcvt.s32.f32 %v1205
          %v1270 = vcvt.s32.f32 %v1206
          %v1271 = vcvt.s32.f32 %v1207
          %v1272 = vcvt.s32.f32 %v1208
          %v1273 = vcvt.s32.f32 %v1209
          %v1274 = vcvt.s32.f32 %v1210
          %v1275 = vcvt.s32.f32 %v1211
          %v1276 = vcvt.s32.f32 %v1212
          %v1277 = vadd.f32 %v973, %v1213
          %v1278 = vadd.f32 %v974, %v1214
          %v1279 = vadd.f32 %v975, %v1215
          %v1280 = vadd.f32 %v976, %v1216
          %v1281 = vadd.f32 %v977, %v1217
          %v1282 = vadd.f32 %v978, %v1218
          %v1283 = vadd.f32 %v979, %v1219
          %v1284 = vadd.f32 %v980, %v1220
          %v1285 = vadd.f32 %v981, %v1221
          %v1286 = vadd.f32 %v982, %v1222
          %v1287 = vadd.f32 %v983, %v1223
          %v1288 = vadd.f32 %v984, %v1224
          %v1289 = vadd.f32 %v985, %v1225
          %v1290 = vadd.f32 %v986, %v1226
          %v1291 = vadd.f32 %v987, %v1227
          %v1292 = vadd.f32 %v988, %v1228
          %v1293 = vadd.f32 %v989, %v1229
          %v1294 = vadd.f32 %v990, %v1230
          %v1295 = vadd.f32 %v991, %v1231
          %v1296 = vadd.f32 %v992, %v1232
          %v1297 = vadd.f32 %v993, %v1233
          %v1298 = vadd.f32 %v994, %v1234
          %v1299 = vadd.f32 %v995, %v1235
          %v1300 = vadd.f32 %v996, %v1236
          %v1301 = vadd.f32 %v997, %v1237
          %v1302 = vadd.f32 %v998, %v1238
          %v1303 = vadd.f32 %v999, %v1239
          %v1304 = vadd.f32 %v1000, %v1240
          %v1305 = vadd.f32 %v1001, %v1241
          %v1306 = vadd.f32 %v1002, %v1242
          %v1307 = vadd.f32 %v1003, %v1243
          %v1308 = vadd.f32 %v1004, %v1244
          %v1309 = vadd.f32 %v1005, %v1245
          %v1310 = vadd.f32 %v1006, %v1246
          %v1311 = vadd.f32 %v1007, %v1247
          %v1312 = vadd.f32 %v1008, %v1248
          %v1313 = vadd.f32 %v1009, %v1249
          %v1314 = vadd.f32 %v1010, %v1250
          %v1315 = vadd.f32 %v1011, %v1251
          %v1316 = vadd.f32 %v1012, %v1252
          %v1317 = vadd.f32 %v1013, %v1253
          %v1318 = vadd.f32 %v1014, %v1254
          %v1319 = vadd.f32 %v1015, %v1255
          %v1320 = vadd.f32 %v1016, %v1256
          %v1321 = vadd.f32 %v1017, %v1257
          %v1322 = vadd.f32 %v1018, %v1258
          %v1323 = vadd.f32 %v1019, %v1259
          %v1324 = vadd.f32 %v1020, %v1260
          %v1325 = vadd.f32 %v1021, %v1261
          %v1326 = vadd.f32 %v1022, %v1262
          %v1327 = vadd.f32 %v1023, %v1263
          %v1328 = vadd.f32 %v1024, %v1264
          %v1329 = vadd.f32 %v1025, %v1265
          %v1330 = vadd.f32 %v1026, %v1266
          %v1331 = vadd.f32 %v1027, %v1267
          %v1332 = vadd.f32 %v1028, %v1268
          %v1333 = vadd.f32 %v1029, %v1269
          %v1334 = vadd.f32 %v1030, %v1270
          %v1335 = vadd.f32 %v1031, %v1271
          %v1336 = vadd.f32 %v1032, %v1272
          %v1337 = vadd.f32 %v1033, %v1273
          %v1338 = vadd.f32 %v1034, %v1274
          %v1339 = vadd.f32 %v1035, %v1275
          %v1340 = vadd.f32 %v1036, %v1276
          %1341 = vset.pattern.permute.xlu0 3
          %1342 = vperm.xlu0 %1341, %v408
          %v1343 = vpop.permute.xlu0 %1342
          %1344 = vset.pattern.permute.xlu0 3
          %1345 = vperm.xlu0 %1344, %v409
          %v1346 = vpop.permute.xlu0 %1345
          %1347 = vset.pattern.permute.xlu0 3
          %1348 = vperm.xlu0 %1347, %v410
          %v1349 = vpop.permute.xlu0 %1348
          %1350 = vset.pattern.permute.xlu0 3
          %1351 = vperm.xlu0 %1350, %v411
          %v1352 = vpop.permute.xlu0 %1351
          %1353 = vset.pattern.permute.xlu0 3
          %1354 = vperm.xlu0 %1353, %v412
          %v1355 = vpop.permute.xlu0 %1354
          %1356 = vset.pattern.permute.xlu0 3
          %1357 = vperm.xlu0 %1356, %v413
          %v1358 = vpop.permute.xlu0 %1357
          %1359 = vset.pattern.permute.xlu0 3
          %1360 = vperm.xlu0 %1359, %v414
          %v1361 = vpop.permute.xlu0 %1360
          %1362 = vset.pattern.permute.xlu0 3
          %1363 = vperm.xlu0 %1362, %v415
          %v1364 = vpop.permute.xlu0 %1363
          %1365 = vset.pattern.permute.xlu0 3
          %1366 = vperm.xlu0 %1365, %v416
          %v1367 = vpop.permute.xlu0 %1366
          %1368 = vset.pattern.permute.xlu0 3
          %1369 = vperm.xlu0 %1368, %v417
          %v1370 = vpop.permute.xlu0 %1369
          %1371 = vset.pattern.permute.xlu0 3
          %1372 = vperm.xlu0 %1371, %v418
          %v1373 = vpop.permute.xlu0 %1372
          %1374 = vset.pattern.permute.xlu0 3
          %1375 = vperm.xlu0 %1374, %v419
          %v1376 = vpop.permute.xlu0 %1375
          %1377 = vset.pattern.permute.xlu0 3
          %1378 = vperm.xlu0 %1377, %v420
          %v1379 = vpop.permute.xlu0 %1378
          %1380 = vset.pattern.permute.xlu0 3
          %1381 = vperm.xlu0 %1380, %v421
          %v1382 = vpop.permute.xlu0 %1381
          %1383 = vset.pattern.permute.xlu0 3
          %1384 = vperm.xlu0 %1383, %v422
          %v1385 = vpop.permute.xlu0 %1384
          %1386 = vset.pattern.permute.xlu0 3
          %1387 = vperm.xlu0 %1386, %v423
          %v1388 = vpop.permute.xlu0 %1387
          %vm1389 = vcmp.eq.s32.totalorder %v1343, %v425
          %vm1390 = vcmp.eq.s32.totalorder %v1343, %v426
          %vm1391 = vcmp.eq.s32.totalorder %v1343, %v427
          %vm1392 = vcmp.eq.s32.totalorder %v1343, %v428
          %vm1393 = vcmp.eq.s32.totalorder %v1346, %v425
          %vm1394 = vcmp.eq.s32.totalorder %v1346, %v426
          %vm1395 = vcmp.eq.s32.totalorder %v1346, %v427
          %vm1396 = vcmp.eq.s32.totalorder %v1346, %v428
          %vm1397 = vcmp.eq.s32.totalorder %v1349, %v425
          %vm1398 = vcmp.eq.s32.totalorder %v1349, %v426
          %vm1399 = vcmp.eq.s32.totalorder %v1349, %v427
          %vm1400 = vcmp.eq.s32.totalorder %v1349, %v428
          %vm1401 = vcmp.eq.s32.totalorder %v1352, %v425
          %vm1402 = vcmp.eq.s32.totalorder %v1352, %v426
          %vm1403 = vcmp.eq.s32.totalorder %v1352, %v427
          %vm1404 = vcmp.eq.s32.totalorder %v1352, %v428
          %vm1405 = vcmp.eq.s32.totalorder %v1355, %v425
          %vm1406 = vcmp.eq.s32.totalorder %v1355, %v426
          %vm1407 = vcmp.eq.s32.totalorder %v1355, %v427
          %vm1408 = vcmp.eq.s32.totalorder %v1355, %v428
          %vm1409 = vcmp.eq.s32.totalorder %v1358, %v425
          %vm1410 = vcmp.eq.s32.totalorder %v1358, %v426
          %vm1411 = vcmp.eq.s32.totalorder %v1358, %v427
          %vm1412 = vcmp.eq.s32.totalorder %v1358, %v428
          %vm1413 = vcmp.eq.s32.totalorder %v1361, %v425
          %vm1414 = vcmp.eq.s32.totalorder %v1361, %v426
          %vm1415 = vcmp.eq.s32.totalorder %v1361, %v427
          %vm1416 = vcmp.eq.s32.totalorder %v1361, %v428
          %vm1417 = vcmp.eq.s32.totalorder %v1364, %v425
          %vm1418 = vcmp.eq.s32.totalorder %v1364, %v426
          %vm1419 = vcmp.eq.s32.totalorder %v1364, %v427
          %vm1420 = vcmp.eq.s32.totalorder %v1364, %v428
          %vm1421 = vcmp.eq.s32.totalorder %v1367, %v425
          %vm1422 = vcmp.eq.s32.totalorder %v1367, %v426
          %vm1423 = vcmp.eq.s32.totalorder %v1367, %v427
          %vm1424 = vcmp.eq.s32.totalorder %v1367, %v428
          %vm1425 = vcmp.eq.s32.totalorder %v1370, %v425
          %vm1426 = vcmp.eq.s32.totalorder %v1370, %v426
          %vm1427 = vcmp.eq.s32.totalorder %v1370, %v427
          %vm1428 = vcmp.eq.s32.totalorder %v1370, %v428
          %vm1429 = vcmp.eq.s32.totalorder %v1373, %v425
          %vm1430 = vcmp.eq.s32.totalorder %v1373, %v426
          %vm1431 = vcmp.eq.s32.totalorder %v1373, %v427
          %vm1432 = vcmp.eq.s32.totalorder %v1373, %v428
          %vm1433 = vcmp.eq.s32.totalorder %v1376, %v425
          %vm1434 = vcmp.eq.s32.totalorder %v1376, %v426
          %vm1435 = vcmp.eq.s32.totalorder %v1376, %v427
          %vm1436 = vcmp.eq.s32.totalorder %v1376, %v428
          %vm1437 = vcmp.eq.s32.totalorder %v1379, %v425
          %vm1438 = vcmp.eq.s32.totalorder %v1379, %v426
          %vm1439 = vcmp.eq.s32.totalorder %v1379, %v427
          %vm1440 = vcmp.eq.s32.totalorder %v1379, %v428
          %vm1441 = vcmp.eq.s32.totalorder %v1382, %v425
          %vm1442 = vcmp.eq.s32.totalorder %v1382, %v426
          %vm1443 = vcmp.eq.s32.totalorder %v1382, %v427
          %vm1444 = vcmp.eq.s32.totalorder %v1382, %v428
          %vm1445 = vcmp.eq.s32.totalorder %v1385, %v425
          %vm1446 = vcmp.eq.s32.totalorder %v1385, %v426
          %vm1447 = vcmp.eq.s32.totalorder %v1385, %v427
          %vm1448 = vcmp.eq.s32.totalorder %v1385, %v428
          %vm1449 = vcmp.eq.s32.totalorder %v1388, %v425
          %vm1450 = vcmp.eq.s32.totalorder %v1388, %v426
          %vm1451 = vcmp.eq.s32.totalorder %v1388, %v427
          %vm1452 = vcmp.eq.s32.totalorder %v1388, %v428
          %v1453 = vsel %vm1389, 1, 0
          %v1454 = vsel %vm1390, 1, 0
          %v1455 = vsel %vm1391, 1, 0
          %v1456 = vsel %vm1392, 1, 0
          %v1457 = vsel %vm1393, 1, 0
          %v1458 = vsel %vm1394, 1, 0
          %v1459 = vsel %vm1395, 1, 0
          %v1460 = vsel %vm1396, 1, 0
          %v1461 = vsel %vm1397, 1, 0
          %v1462 = vsel %vm1398, 1, 0
          %v1463 = vsel %vm1399, 1, 0
          %v1464 = vsel %vm1400, 1, 0
          %v1465 = vsel %vm1401, 1, 0
          %v1466 = vsel %vm1402, 1, 0
          %v1467 = vsel %vm1403, 1, 0
          %v1468 = vsel %vm1404, 1, 0
          %v1469 = vsel %vm1405, 1, 0
          %v1470 = vsel %vm1406, 1, 0
          %v1471 = vsel %vm1407, 1, 0
          %v1472 = vsel %vm1408, 1, 0
          %v1473 = vsel %vm1409, 1, 0
          %v1474 = vsel %vm1410, 1, 0
          %v1475 = vsel %vm1411, 1, 0
          %v1476 = vsel %vm1412, 1, 0
          %v1477 = vsel %vm1413, 1, 0
          %v1478 = vsel %vm1414, 1, 0
          %v1479 = vsel %vm1415, 1, 0
          %v1480 = vsel %vm1416, 1, 0
          %v1481 = vsel %vm1417, 1, 0
          %v1482 = vsel %vm1418, 1, 0
          %v1483 = vsel %vm1419, 1, 0
          %v1484 = vsel %vm1420, 1, 0
          %v1485 = vsel %vm1421, 1, 0
          %v1486 = vsel %vm1422, 1, 0
          %v1487 = vsel %vm1423, 1, 0
          %v1488 = vsel %vm1424, 1, 0
          %v1489 = vsel %vm1425, 1, 0
          %v1490 = vsel %vm1426, 1, 0
          %v1491 = vsel %vm1427, 1, 0
          %v1492 = vsel %vm1428, 1, 0
          %v1493 = vsel %vm1429, 1, 0
          %v1494 = vsel %vm1430, 1, 0
          %v1495 = vsel %vm1431, 1, 0
          %v1496 = vsel %vm1432, 1, 0
          %v1497 = vsel %vm1433, 1, 0
          %v1498 = vsel %vm1434, 1, 0
          %v1499 = vsel %vm1435, 1, 0
          %v1500 = vsel %vm1436, 1, 0
          %v1501 = vsel %vm1437, 1, 0
          %v1502 = vsel %vm1438, 1, 0
          %v1503 = vsel %vm1439, 1, 0
          %v1504 = vsel %vm1440, 1, 0
          %v1505 = vsel %vm1441, 1, 0
          %v1506 = vsel %vm1442, 1, 0
          %v1507 = vsel %vm1443, 1, 0
          %v1508 = vsel %vm1444, 1, 0
          %v1509 = vsel %vm1445, 1, 0
          %v1510 = vsel %vm1446, 1, 0
          %v1511 = vsel %vm1447, 1, 0
          %v1512 = vsel %vm1448, 1, 0
          %v1513 = vsel %vm1449, 1, 0
          %v1514 = vsel %vm1450, 1, 0
          %v1515 = vsel %vm1451, 1, 0
          %v1516 = vsel %vm1452, 1, 0
          %v1517 = vcvt.s32.f32 %v1453
          %v1518 = vcvt.s32.f32 %v1454
          %v1519 = vcvt.s32.f32 %v1455
          %v1520 = vcvt.s32.f32 %v1456
          %v1521 = vcvt.s32.f32 %v1457
          %v1522 = vcvt.s32.f32 %v1458
          %v1523 = vcvt.s32.f32 %v1459
          %v1524 = vcvt.s32.f32 %v1460
          %v1525 = vcvt.s32.f32 %v1461
          %v1526 = vcvt.s32.f32 %v1462
          %v1527 = vcvt.s32.f32 %v1463
          %v1528 = vcvt.s32.f32 %v1464
          %v1529 = vcvt.s32.f32 %v1465
          %v1530 = vcvt.s32.f32 %v1466
          %v1531 = vcvt.s32.f32 %v1467
          %v1532 = vcvt.s32.f32 %v1468
          %v1533 = vcvt.s32.f32 %v1469
          %v1534 = vcvt.s32.f32 %v1470
          %v1535 = vcvt.s32.f32 %v1471
          %v1536 = vcvt.s32.f32 %v1472
          %v1537 = vcvt.s32.f32 %v1473
          %v1538 = vcvt.s32.f32 %v1474
          %v1539 = vcvt.s32.f32 %v1475
          %v1540 = vcvt.s32.f32 %v1476
          %v1541 = vcvt.s32.f32 %v1477
          %v1542 = vcvt.s32.f32 %v1478
          %v1543 = vcvt.s32.f32 %v1479
          %v1544 = vcvt.s32.f32 %v1480
          %v1545 = vcvt.s32.f32 %v1481
          %v1546 = vcvt.s32.f32 %v1482
          %v1547 = vcvt.s32.f32 %v1483
          %v1548 = vcvt.s32.f32 %v1484
          %v1549 = vcvt.s32.f32 %v1485
          %v1550 = vcvt.s32.f32 %v1486
          %v1551 = vcvt.s32.f32 %v1487
          %v1552 = vcvt.s32.f32 %v1488
          %v1553 = vcvt.s32.f32 %v1489
          %v1554 = vcvt.s32.f32 %v1490
          %v1555 = vcvt.s32.f32 %v1491
          %v1556 = vcvt.s32.f32 %v1492
          %v1557 = vcvt.s32.f32 %v1493
          %v1558 = vcvt.s32.f32 %v1494
          %v1559 = vcvt.s32.f32 %v1495
          %v1560 = vcvt.s32.f32 %v1496
          %v1561 = vcvt.s32.f32 %v1497
          %v1562 = vcvt.s32.f32 %v1498
          %v1563 = vcvt.s32.f32 %v1499
          %v1564 = vcvt.s32.f32 %v1500
          %v1565 = vcvt.s32.f32 %v1501
          %v1566 = vcvt.s32.f32 %v1502
          %v1567 = vcvt.s32.f32 %v1503
          %v1568 = vcvt.s32.f32 %v1504
          %v1569 = vcvt.s32.f32 %v1505
          %v1570 = vcvt.s32.f32 %v1506
          %v1571 = vcvt.s32.f32 %v1507
          %v1572 = vcvt.s32.f32 %v1508
          %v1573 = vcvt.s32.f32 %v1509
          %v1574 = vcvt.s32.f32 %v1510
          %v1575 = vcvt.s32.f32 %v1511
          %v1576 = vcvt.s32.f32 %v1512
          %v1577 = vcvt.s32.f32 %v1513
          %v1578 = vcvt.s32.f32 %v1514
          %v1579 = vcvt.s32.f32 %v1515
          %v1580 = vcvt.s32.f32 %v1516
          %v1581 = vadd.f32 %v1277, %v1517
          %v1582 = vadd.f32 %v1278, %v1518
          %v1583 = vadd.f32 %v1279, %v1519
          %v1584 = vadd.f32 %v1280, %v1520
          %v1585 = vadd.f32 %v1281, %v1521
          %v1586 = vadd.f32 %v1282, %v1522
          %v1587 = vadd.f32 %v1283, %v1523
          %v1588 = vadd.f32 %v1284, %v1524
          %v1589 = vadd.f32 %v1285, %v1525
          %v1590 = vadd.f32 %v1286, %v1526
          %v1591 = vadd.f32 %v1287, %v1527
          %v1592 = vadd.f32 %v1288, %v1528
          %v1593 = vadd.f32 %v1289, %v1529
          %v1594 = vadd.f32 %v1290, %v1530
          %v1595 = vadd.f32 %v1291, %v1531
          %v1596 = vadd.f32 %v1292, %v1532
          %v1597 = vadd.f32 %v1293, %v1533
          %v1598 = vadd.f32 %v1294, %v1534
          %v1599 = vadd.f32 %v1295, %v1535
          %v1600 = vadd.f32 %v1296, %v1536
          %v1601 = vadd.f32 %v1297, %v1537
          %v1602 = vadd.f32 %v1298, %v1538
          %v1603 = vadd.f32 %v1299, %v1539
          %v1604 = vadd.f32 %v1300, %v1540
          %v1605 = vadd.f32 %v1301, %v1541
          %v1606 = vadd.f32 %v1302, %v1542
          %v1607 = vadd.f32 %v1303, %v1543
          %v1608 = vadd.f32 %v1304, %v1544
          %v1609 = vadd.f32 %v1305, %v1545
          %v1610 = vadd.f32 %v1306, %v1546
          %v1611 = vadd.f32 %v1307, %v1547
          %v1612 = vadd.f32 %v1308, %v1548
          %v1613 = vadd.f32 %v1309, %v1549
          %v1614 = vadd.f32 %v1310, %v1550
          %v1615 = vadd.f32 %v1311, %v1551
          %v1616 = vadd.f32 %v1312, %v1552
          %v1617 = vadd.f32 %v1313, %v1553
          %v1618 = vadd.f32 %v1314, %v1554
          %v1619 = vadd.f32 %v1315, %v1555
          %v1620 = vadd.f32 %v1316, %v1556
          %v1621 = vadd.f32 %v1317, %v1557
          %v1622 = vadd.f32 %v1318, %v1558
          %v1623 = vadd.f32 %v1319, %v1559
          %v1624 = vadd.f32 %v1320, %v1560
          %v1625 = vadd.f32 %v1321, %v1561
          %v1626 = vadd.f32 %v1322, %v1562
          %v1627 = vadd.f32 %v1323, %v1563
          %v1628 = vadd.f32 %v1324, %v1564
          %v1629 = vadd.f32 %v1325, %v1565
          %v1630 = vadd.f32 %v1326, %v1566
          %v1631 = vadd.f32 %v1327, %v1567
          %v1632 = vadd.f32 %v1328, %v1568
          %v1633 = vadd.f32 %v1329, %v1569
          %v1634 = vadd.f32 %v1330, %v1570
          %v1635 = vadd.f32 %v1331, %v1571
          %v1636 = vadd.f32 %v1332, %v1572
          %v1637 = vadd.f32 %v1333, %v1573
          %v1638 = vadd.f32 %v1334, %v1574
          %v1639 = vadd.f32 %v1335, %v1575
          %v1640 = vadd.f32 %v1336, %v1576
          %v1641 = vadd.f32 %v1337, %v1577
          %v1642 = vadd.f32 %v1338, %v1578
          %v1643 = vadd.f32 %v1339, %v1579
          %v1644 = vadd.f32 %v1340, %v1580
          %v1645 = vpack.c.bf16 %v1585, %v1581
          %v1646 = vpack.c.bf16 %v1586, %v1582
          %v1647 = vpack.c.bf16 %v1587, %v1583
          %v1648 = vpack.c.bf16 %v1588, %v1584
          %v1649 = vpack.c.bf16 %v1593, %v1589
          %v1650 = vpack.c.bf16 %v1594, %v1590
          %v1651 = vpack.c.bf16 %v1595, %v1591
          %v1652 = vpack.c.bf16 %v1596, %v1592
          %v1653 = vpack.c.bf16 %v1601, %v1597
          %v1654 = vpack.c.bf16 %v1602, %v1598
          %v1655 = vpack.c.bf16 %v1603, %v1599
          %v1656 = vpack.c.bf16 %v1604, %v1600
          %v1657 = vpack.c.bf16 %v1609, %v1605
          %v1658 = vpack.c.bf16 %v1610, %v1606
          %v1659 = vpack.c.bf16 %v1611, %v1607
          %v1660 = vpack.c.bf16 %v1612, %v1608
          %v1661 = vpack.c.bf16 %v1617, %v1613
          %v1662 = vpack.c.bf16 %v1618, %v1614
          %v1663 = vpack.c.bf16 %v1619, %v1615
          %v1664 = vpack.c.bf16 %v1620, %v1616
          %v1665 = vpack.c.bf16 %v1625, %v1621
          %v1666 = vpack.c.bf16 %v1626, %v1622
          %v1667 = vpack.c.bf16 %v1627, %v1623
          %v1668 = vpack.c.bf16 %v1628, %v1624
          %v1669 = vpack.c.bf16 %v1633, %v1629
          %v1670 = vpack.c.bf16 %v1634, %v1630
          %v1671 = vpack.c.bf16 %v1635, %v1631
          %v1672 = vpack.c.bf16 %v1636, %v1632
          %v1673 = vpack.c.bf16 %v1641, %v1637
          %v1674 = vpack.c.bf16 %v1642, %v1638
          %v1675 = vpack.c.bf16 %v1643, %v1639
          %v1676 = vpack.c.bf16 %v1644, %v1640
          %v1677 = vld [vmem:[#allocation6] sm:$0xf]
          %v1678 = vld [vmem:[#allocation6 + $0x4] sm:$0xf]
          %v1679 = vld [vmem:[#allocation6 + $0x8] sm:$0xf]
          %v1680 = vld [vmem:[#allocation6 + $0xc] sm:$0xf]
          %v1681 = vld [vmem:[#allocation6 + $0x10] sm:$0xf]
          %v1682 = vld [vmem:[#allocation6 + $0x14] sm:$0xf]
          %v1683 = vld [vmem:[#allocation6 + $0x18] sm:$0xf]
          %v1684 = vld [vmem:[#allocation6 + $0x1c] sm:$0xf]
          %v1685 = vld [vmem:[#allocation6 + $0x20] sm:$0xf]
          %v1686 = vld [vmem:[#allocation6 + $0x24] sm:$0xf]
          %v1687 = vld [vmem:[#allocation6 + $0x28] sm:$0xf]
          %v1688 = vld [vmem:[#allocation6 + $0x2c] sm:$0xf]
          %v1689 = vld [vmem:[#allocation6 + $0x30] sm:$0xf]
          %v1690 = vld [vmem:[#allocation6 + $0x34] sm:$0xf]
          %v1691 = vld [vmem:[#allocation6 + $0x38] sm:$0xf]
          %v1692 = vld [vmem:[#allocation6 + $0x3c] sm:$0xf]
          %v1693 = vld [vmem:[#allocation6 + $0x40] sm:$0xf]
          %v1694 = vld [vmem:[#allocation6 + $0x44] sm:$0xf]
          %v1695 = vld [vmem:[#allocation6 + $0x48] sm:$0xf]
          %v1696 = vld [vmem:[#allocation6 + $0x4c] sm:$0xf]
          %v1697 = vld [vmem:[#allocation6 + $0x50] sm:$0xf]
          %v1698 = vld [vmem:[#allocation6 + $0x54] sm:$0xf]
          %v1699 = vld [vmem:[#allocation6 + $0x58] sm:$0xf]
          %v1700 = vld [vmem:[#allocation6 + $0x5c] sm:$0xf]
          %v1701 = vld [vmem:[#allocation6 + $0x60] sm:$0xf]
          %v1702 = vld [vmem:[#allocation6 + $0x64] sm:$0xf]
          %v1703 = vld [vmem:[#allocation6 + $0x68] sm:$0xf]
          %v1704 = vld [vmem:[#allocation6 + $0x6c] sm:$0xf]
          %v1705 = vld [vmem:[#allocation6 + $0x70] sm:$0xf]
          %v1706 = vld [vmem:[#allocation6 + $0x74] sm:$0xf]
          %v1707 = vld [vmem:[#allocation6 + $0x78] sm:$0xf]
          %v1708 = vld [vmem:[#allocation6 + $0x7c] sm:$0xf]
          %v1709 = vld [vmem:[#allocation6 + $0x80] sm:$0xf]
          %v1710 = vld [vmem:[#allocation6 + $0x84] sm:$0xf]
          %v1711 = vld [vmem:[#allocation6 + $0x88] sm:$0xf]
          %v1712 = vld [vmem:[#allocation6 + $0x8c] sm:$0xf]
          %v1713 = vld [vmem:[#allocation6 + $0x90] sm:$0xf]
          %v1714 = vld [vmem:[#allocation6 + $0x94] sm:$0xf]
          %v1715 = vld [vmem:[#allocation6 + $0x98] sm:$0xf]
          %v1716 = vld [vmem:[#allocation6 + $0x9c] sm:$0xf]
          %v1717 = vld [vmem:[#allocation6 + $0xa0] sm:$0xf]
          %v1718 = vld [vmem:[#allocation6 + $0xa4] sm:$0xf]
          %v1719 = vld [vmem:[#allocation6 + $0xa8] sm:$0xf]
          %v1720 = vld [vmem:[#allocation6 + $0xac] sm:$0xf]
          %v1721 = vld [vmem:[#allocation6 + $0xb0] sm:$0xf]
          %v1722 = vld [vmem:[#allocation6 + $0xb4] sm:$0xf]
          %v1723 = vld [vmem:[#allocation6 + $0xb8] sm:$0xf]
          %v1724 = vld [vmem:[#allocation6 + $0xbc] sm:$0xf]
          %v1725 = vld [vmem:[#allocation6 + $0xc0] sm:$0xf]
          %v1726 = vld [vmem:[#allocation6 + $0xc4] sm:$0xf]
          %v1727 = vld [vmem:[#allocation6 + $0xc8] sm:$0xf]
          %v1728 = vld [vmem:[#allocation6 + $0xcc] sm:$0xf]
          %v1729 = vld [vmem:[#allocation6 + $0xd0] sm:$0xf]
          %v1730 = vld [vmem:[#allocation6 + $0xd4] sm:$0xf]
          %v1731 = vld [vmem:[#allocation6 + $0xd8] sm:$0xf]
          %v1732 = vld [vmem:[#allocation6 + $0xdc] sm:$0xf]
          %v1733 = vld [vmem:[#allocation6 + $0xe0] sm:$0xf]
          %v1734 = vld [vmem:[#allocation6 + $0xe4] sm:$0xf]
          %v1735 = vld [vmem:[#allocation6 + $0xe8] sm:$0xf]
          %v1736 = vld [vmem:[#allocation6 + $0xec] sm:$0xf]
          %v1737 = vld [vmem:[#allocation6 + $0xf0] sm:$0xf]
          %v1738 = vld [vmem:[#allocation6 + $0xf4] sm:$0xf]
          %v1739 = vld [vmem:[#allocation6 + $0xf8] sm:$0xf]
          %v1740 = vld [vmem:[#allocation6 + $0xfc] sm:$0xf]
          %v1805 = vunpack.c.l.b16 %v1677
          %v1806 = vunpack.c.l.b16 %v1678
          %v1807 = vunpack.c.l.b16 %v1679
          %v1808 = vunpack.c.l.b16 %v1680
          %v1809 = vunpack.c.l.b16 %v1681
          %v1810 = vunpack.c.l.b16 %v1682
          %v1811 = vunpack.c.l.b16 %v1683
          %v1812 = vunpack.c.l.b16 %v1684
          %v1813 = vunpack.c.l.b16 %v1685
          %v1814 = vunpack.c.l.b16 %v1686
          %v1815 = vunpack.c.l.b16 %v1687
          %v1816 = vunpack.c.l.b16 %v1688
          %v1817 = vunpack.c.l.b16 %v1689
          %v1818 = vunpack.c.l.b16 %v1690
          %v1819 = vunpack.c.l.b16 %v1691
          %v1820 = vunpack.c.l.b16 %v1692
          %v1821 = vunpack.c.l.b16 %v1693
          %v1822 = vunpack.c.l.b16 %v1694
          %v1823 = vunpack.c.l.b16 %v1695
          %v1824 = vunpack.c.l.b16 %v1696
          %v1825 = vunpack.c.l.b16 %v1697
          %v1826 = vunpack.c.l.b16 %v1698
          %v1827 = vunpack.c.l.b16 %v1699
          %v1828 = vunpack.c.l.b16 %v1700
          %v1829 = vunpack.c.l.b16 %v1701
          %v1830 = vunpack.c.l.b16 %v1702
          %v1831 = vunpack.c.l.b16 %v1703
          %v1832 = vunpack.c.l.b16 %v1704
          %v1833 = vunpack.c.l.b16 %v1705
          %v1834 = vunpack.c.l.b16 %v1706
          %v1835 = vunpack.c.l.b16 %v1707
          %v1836 = vunpack.c.l.b16 %v1708
          %v1837 = vunpack.c.l.b16 %v1709
          %v1838 = vunpack.c.l.b16 %v1710
          %v1839 = vunpack.c.l.b16 %v1711
          %v1840 = vunpack.c.l.b16 %v1712
          %v1841 = vunpack.c.l.b16 %v1713
          %v1842 = vunpack.c.l.b16 %v1714
          %v1843 = vunpack.c.l.b16 %v1715
          %v1844 = vunpack.c.l.b16 %v1716
          %v1845 = vunpack.c.l.b16 %v1717
          %v1846 = vunpack.c.l.b16 %v1718
          %v1847 = vunpack.c.l.b16 %v1719
          %v1848 = vunpack.c.l.b16 %v1720
          %v1849 = vunpack.c.l.b16 %v1721
          %v1850 = vunpack.c.l.b16 %v1722
          %v1851 = vunpack.c.l.b16 %v1723
          %v1852 = vunpack.c.l.b16 %v1724
          %v1853 = vunpack.c.l.b16 %v1725
          %v1854 = vunpack.c.l.b16 %v1726
          %v1855 = vunpack.c.l.b16 %v1727
          %v1856 = vunpack.c.l.b16 %v1728
          %v1857 = vunpack.c.l.b16 %v1729
          %v1858 = vunpack.c.l.b16 %v1730
          %v1859 = vunpack.c.l.b16 %v1731
          %v1860 = vunpack.c.l.b16 %v1732
          %v1861 = vunpack.c.l.b16 %v1733
          %v1862 = vunpack.c.l.b16 %v1734
          %v1863 = vunpack.c.l.b16 %v1735
          %v1864 = vunpack.c.l.b16 %v1736
          %v1865 = vunpack.c.l.b16 %v1737
          %v1866 = vunpack.c.l.b16 %v1738
          %v1867 = vunpack.c.l.b16 %v1739
          %v1868 = vunpack.c.l.b16 %v1740
          %v1869 = vpack.c.b16 %v1806, %v1805
          %v1870 = vpack.c.b16 %v1808, %v1807
          %v1871 = vpack.c.b16 %v1810, %v1809
          %v1872 = vpack.c.b16 %v1812, %v1811
          %v1873 = vpack.c.b16 %v1814, %v1813
          %v1874 = vpack.c.b16 %v1816, %v1815
          %v1875 = vpack.c.b16 %v1818, %v1817
          %v1876 = vpack.c.b16 %v1820, %v1819
          %v1877 = vpack.c.b16 %v1822, %v1821
          %v1878 = vpack.c.b16 %v1824, %v1823
          %v1879 = vpack.c.b16 %v1826, %v1825
          %v1880 = vpack.c.b16 %v1828, %v1827
          %v1881 = vpack.c.b16 %v1830, %v1829
          %v1882 = vpack.c.b16 %v1832, %v1831
          %v1883 = vpack.c.b16 %v1834, %v1833
          %v1884 = vpack.c.b16 %v1836, %v1835
          %v1885 = vpack.c.b16 %v1838, %v1837
          %v1886 = vpack.c.b16 %v1840, %v1839
          %v1887 = vpack.c.b16 %v1842, %v1841
          %v1888 = vpack.c.b16 %v1844, %v1843
          %v1889 = vpack.c.b16 %v1846, %v1845
          %v1890 = vpack.c.b16 %v1848, %v1847
          %v1891 = vpack.c.b16 %v1850, %v1849
          %v1892 = vpack.c.b16 %v1852, %v1851
          %v1893 = vpack.c.b16 %v1854, %v1853
          %v1894 = vpack.c.b16 %v1856, %v1855
          %v1895 = vpack.c.b16 %v1858, %v1857
          %v1896 = vpack.c.b16 %v1860, %v1859
          %v1897 = vpack.c.b16 %v1862, %v1861
          %v1898 = vpack.c.b16 %v1864, %v1863
          %v1899 = vpack.c.b16 %v1866, %v1865
          %v1900 = vpack.c.b16 %v1868, %v1867
          %1933 = vmatprep.subr.bf16.mxu0 0
          %1934 = vmatpush1.bf16.msra.mxu0 %v1869
          %1935 = vmatprep.subr.bf16.mxu0 0
          %1936 = vmatpush1.bf16.msra.mxu0 %v1870
          %1937 = vmatprep.subr.bf16.mxu0 0
          %1938 = vmatpush1.bf16.msra.mxu0 %v1871
          %1939 = vmatprep.subr.bf16.mxu0 0
          %1940 = vmatpush1.bf16.msra.mxu0 %v1872
          %1941 = vmatprep.subr.bf16.mxu0 0
          %1942 = vmatpush1.bf16.msra.mxu0 %v1873
          %1943 = vmatprep.subr.bf16.mxu0 0
          %1944 = vmatpush1.bf16.msra.mxu0 %v1874
          %1945 = vmatprep.subr.bf16.mxu0 0
          %1946 = vmatpush1.bf16.msra.mxu0 %v1875
          %1947 = vmatprep.subr.bf16.mxu0 0
          %1948 = vmatpush1.bf16.msra.mxu0 %v1876
          %1949 = vmatprep.subr.bf16.mxu0 0
          %1950 = vmatpush1.bf16.msra.mxu0 %v1877
          %1951 = vmatprep.subr.bf16.mxu0 0
          %1952 = vmatpush1.bf16.msra.mxu0 %v1878
          %1953 = vmatprep.subr.bf16.mxu0 0
          %1954 = vmatpush1.bf16.msra.mxu0 %v1879
          %1955 = vmatprep.subr.bf16.mxu0 0
          %1956 = vmatpush1.bf16.msra.mxu0 %v1880
          %1957 = vmatprep.subr.bf16.mxu0 0
          %1958 = vmatpush1.bf16.msra.mxu0 %v1881
          %1959 = vmatprep.subr.bf16.mxu0 0
          %1960 = vmatpush1.bf16.msra.mxu0 %v1882
          %1961 = vmatprep.subr.bf16.mxu0 0
          %1962 = vmatpush1.bf16.msra.mxu0 %v1883
          %1963 = vmatprep.subr.bf16.mxu0 0
          %1964 = vmatpush1.bf16.msra.mxu0 %v1884
          %1965 = vmatprep.mubr.bf16.mxu0 %v1646
          %1966 = vmatmul.mubr.bf16.gmra.mrb[0].mxu0 %v1645
          %v1967 = vpop.f32.mrb[0].mxu0
          %v1968 = vadd.f32 0.0, %v1967
          %v1969 = vpop.f32.mrb[0].mxu0
          %v1970 = vpop.f32.mrb[0].mxu0
          %v1971 = vadd.f32 0.0, %v1970
          %v1972 = vpop.f32.mrb[0].mxu0
          %1973 = vmatprep.mubr.bf16.mxu0 %v1650
          %1974 = vmatmul.mubr.bf16.gmra.mrb[0].mxu0 %v1649
          %v1975 = vpop.f32.mrb[0].mxu0
          %v1976 = vadd.f32 0.0, %v1975
          %v1977 = vpop.f32.mrb[0].mxu0
          %v1978 = vpop.f32.mrb[0].mxu0
          %v1979 = vadd.f32 0.0, %v1978
          %v1980 = vpop.f32.mrb[0].mxu0
          %1981 = vmatprep.mubr.bf16.mxu0 %v1654
          %1982 = vmatmul.mubr.bf16.gmra.mrb[0].mxu0 %v1653
          %v1983 = vpop.f32.mrb[0].mxu0
          %v1984 = vadd.f32 0.0, %v1983
          %v1985 = vpop.f32.mrb[0].mxu0
          %v1986 = vpop.f32.mrb[0].mxu0
          %v1987 = vadd.f32 0.0, %v1986
          %v1988 = vpop.f32.mrb[0].mxu0
          %1989 = vmatprep.mubr.bf16.mxu0 %v1658
          %1990 = vmatmul.mubr.bf16.gmra.mrb[0].mxu0 %v1657
          %v1991 = vpop.f32.mrb[0].mxu0
          %v1992 = vadd.f32 0.0, %v1991
          %v1993 = vpop.f32.mrb[0].mxu0
          %v1994 = vpop.f32.mrb[0].mxu0
          %v1995 = vadd.f32 0.0, %v1994
          %v1996 = vpop.f32.mrb[0].mxu0
          %1997 = vmatprep.mubr.bf16.mxu0 %v1662
          %1998 = vmatmul.mubr.bf16.gmra.mrb[0].mxu0 %v1661
          %v1999 = vpop.f32.mrb[0].mxu0
          %v2000 = vadd.f32 0.0, %v1999
          %v2001 = vpop.f32.mrb[0].mxu0
          %v2002 = vpop.f32.mrb[0].mxu0
          %v2003 = vadd.f32 0.0, %v2002
          %v2004 = vpop.f32.mrb[0].mxu0
          %2005 = vmatprep.mubr.bf16.mxu0 %v1666
          %2006 = vmatmul.mubr.bf16.gmra.mrb[0].mxu0 %v1665
          %v2007 = vpop.f32.mrb[0].mxu0
          %v2008 = vadd.f32 0.0, %v2007
          %v2009 = vpop.f32.mrb[0].mxu0
          %v2010 = vpop.f32.mrb[0].mxu0
          %v2011 = vadd.f32 0.0, %v2010
          %v2012 = vpop.f32.mrb[0].mxu0
          %2013 = vmatprep.mubr.bf16.mxu0 %v1670
          %2014 = vmatmul.mubr.bf16.gmra.mrb[0].mxu0 %v1669
          %v2015 = vpop.f32.mrb[0].mxu0
          %v2016 = vadd.f32 0.0, %v2015
          %v2017 = vpop.f32.mrb[0].mxu0
          %v2018 = vpop.f32.mrb[0].mxu0
          %v2019 = vadd.f32 0.0, %v2018
          %v2020 = vpop.f32.mrb[0].mxu0
          %2021 = vmatprep.mubr.bf16.mxu0 %v1674
          %2022 = vmatmul.mubr.bf16.gmra.mrb[0].mxu0 %v1673
          %v2023 = vpop.f32.mrb[0].mxu0
          %v2024 = vadd.f32 0.0, %v2023
          %v2025 = vpop.f32.mrb[0].mxu0
          %v2026 = vpop.f32.mrb[0].mxu0
          %v2027 = vadd.f32 0.0, %v2026
          %v2028 = vpop.f32.mrb[0].mxu0
          %2029 = vdwg.mxu0
          %2030 = vmatprep.subr.bf16.mxu0 0
          %2031 = vmatpush1.bf16.msra.mxu0 %v1885
          %2032 = vmatprep.subr.bf16.mxu0 0
          %2033 = vmatpush1.bf16.msra.mxu0 %v1886
          %2034 = vmatprep.subr.bf16.mxu0 0
          %2035 = vmatpush1.bf16.msra.mxu0 %v1887
          %2036 = vmatprep.subr.bf16.mxu0 0
          %2037 = vmatpush1.bf16.msra.mxu0 %v1888
          %2038 = vmatprep.subr.bf16.mxu0 0
          %2039 = vmatpush1.bf16.msra.mxu0 %v1889
          %2040 = vmatprep.subr.bf16.mxu0 0
          %2041 = vmatpush1.bf16.msra.mxu0 %v1890
          %2042 = vmatprep.subr.bf16.mxu0 0
          %2043 = vmatpush1.bf16.msra.mxu0 %v1891
          %2044 = vmatprep.subr.bf16.mxu0 0
          %2045 = vmatpush1.bf16.msra.mxu0 %v1892
          %2046 = vmatprep.subr.bf16.mxu0 0
          %2047 = vmatpush1.bf16.msra.mxu0 %v1893
          %2048 = vmatprep.subr.bf16.mxu0 0
          %2049 = vmatpush1.bf16.msra.mxu0 %v1894
          %2050 = vmatprep.subr.bf16.mxu0 0
          %2051 = vmatpush1.bf16.msra.mxu0 %v1895
          %2052 = vmatprep.subr.bf16.mxu0 0
          %2053 = vmatpush1.bf16.msra.mxu0 %v1896
          %2054 = vmatprep.subr.bf16.mxu0 0
          %2055 = vmatpush1.bf16.msra.mxu0 %v1897
          %2056 = vmatprep.subr.bf16.mxu0 0
          %2057 = vmatpush1.bf16.msra.mxu0 %v1898
          %2058 = vmatprep.subr.bf16.mxu0 0
          %2059 = vmatpush1.bf16.msra.mxu0 %v1899
          %2060 = vmatprep.subr.bf16.mxu0 0
          %2061 = vmatpush1.bf16.msra.mxu0 %v1900
          %2062 = vmatprep.mubr.bf16.mxu0 %v1648
          %2063 = vmatmul.mubr.bf16.gmra.mrb[0].mxu0 %v1647
          %v2064 = vpop.f32.mrb[0].mxu0
          %v2065 = vadd.f32 %v1968, %v2064
          %v2066 = vpop.f32.mrb[0].mxu0
          %v2067 = vpop.f32.mrb[0].mxu0
          %v2068 = vadd.f32 %v1971, %v2067
          %v2069 = vpop.f32.mrb[0].mxu0
          %2070 = vmatprep.mubr.bf16.mxu0 %v1652
          %2071 = vmatmul.mubr.bf16.gmra.mrb[0].mxu0 %v1651
          %v2072 = vpop.f32.mrb[0].mxu0
          %v2073 = vadd.f32 %v1976, %v2072
          %v2074 = vpop.f32.mrb[0].mxu0
          %v2075 = vpop.f32.mrb[0].mxu0
          %v2076 = vadd.f32 %v1979, %v2075
          %v2077 = vpop.f32.mrb[0].mxu0
          %2078 = vmatprep.mubr.bf16.mxu0 %v1656
          %2079 = vmatmul.mubr.bf16.gmra.mrb[0].mxu0 %v1655
          %v2080 = vpop.f32.mrb[0].mxu0
          %v2081 = vadd.f32 %v1984, %v2080
          %v2082 = vpop.f32.mrb[0].mxu0
          %v2083 = vpop.f32.mrb[0].mxu0
          %v2084 = vadd.f32 %v1987, %v2083
          %v2085 = vpop.f32.mrb[0].mxu0
          %2086 = vmatprep.mubr.bf16.mxu0 %v1660
          %2087 = vmatmul.mubr.bf16.gmra.mrb[0].mxu0 %v1659
          %v2088 = vpop.f32.mrb[0].mxu0
          %v2089 = vadd.f32 %v1992, %v2088
          %v2090 = vpop.f32.mrb[0].mxu0
          %v2091 = vpop.f32.mrb[0].mxu0
          %v2092 = vadd.f32 %v1995, %v2091
          %v2093 = vpop.f32.mrb[0].mxu0
          %2094 = vmatprep.mubr.bf16.mxu0 %v1664
          %2095 = vmatmul.mubr.bf16.gmra.mrb[0].mxu0 %v1663
          %v2096 = vpop.f32.mrb[0].mxu0
          %v2097 = vadd.f32 %v2000, %v2096
          %v2098 = vpop.f32.mrb[0].mxu0
          %v2099 = vpop.f32.mrb[0].mxu0
          %v2100 = vadd.f32 %v2003, %v2099
          %v2101 = vpop.f32.mrb[0].mxu0
          %2102 = vmatprep.mubr.bf16.mxu0 %v1668
          %2103 = vmatmul.mubr.bf16.gmra.mrb[0].mxu0 %v1667
          %v2104 = vpop.f32.mrb[0].mxu0
          %v2105 = vadd.f32 %v2008, %v2104
          %v2106 = vpop.f32.mrb[0].mxu0
          %v2107 = vpop.f32.mrb[0].mxu0
          %v2108 = vadd.f32 %v2011, %v2107
          %v2109 = vpop.f32.mrb[0].mxu0
          %2110 = vmatprep.mubr.bf16.mxu0 %v1672
          %2111 = vmatmul.mubr.bf16.gmra.mrb[0].mxu0 %v1671
          %v2112 = vpop.f32.mrb[0].mxu0
          %v2113 = vadd.f32 %v2016, %v2112
          %v2114 = vpop.f32.mrb[0].mxu0
          %v2115 = vpop.f32.mrb[0].mxu0
          %v2116 = vadd.f32 %v2019, %v2115
          %v2117 = vpop.f32.mrb[0].mxu0
          %2118 = vmatprep.mubr.bf16.mxu0 %v1676
          %2119 = vmatmul.mubr.bf16.gmra.mrb[0].mxu0 %v1675
          %v2120 = vpop.f32.mrb[0].mxu0
          %v2121 = vadd.f32 %v2024, %v2120
          %v2122 = vpop.f32.mrb[0].mxu0
          %v2123 = vpop.f32.mrb[0].mxu0
          %v2124 = vadd.f32 %v2027, %v2123
          %v2125 = vpop.f32.mrb[0].mxu0
          %2126 = vdwg.mxu0
          %v2127 = vpack.c.bf16 %v2068, %v2065
          %v2128 = vpack.c.bf16 %v2076, %v2073
          %v2129 = vpack.c.bf16 %v2084, %v2081
          %v2130 = vpack.c.bf16 %v2092, %v2089
          %v2131 = vpack.c.bf16 %v2100, %v2097
          %v2132 = vpack.c.bf16 %v2108, %v2105
          %v2133 = vpack.c.bf16 %v2116, %v2113
          %v2134 = vpack.c.bf16 %v2124, %v2121
          %v2135 = vld [vmem:[#allocation8] sm:$0xf]
          %v2136 = vld [vmem:[#allocation8 + $0x4] sm:$0xf]
          %v2137 = vld [vmem:[#allocation8 + $0x8] sm:$0xf]
          %v2138 = vld [vmem:[#allocation8 + $0xc] sm:$0xf]
          %v2139 = vld [vmem:[#allocation8 + $0x10] sm:$0xf]
          %v2140 = vld [vmem:[#allocation8 + $0x14] sm:$0xf]
          %v2141 = vld [vmem:[#allocation8 + $0x18] sm:$0xf]
          %v2142 = vld [vmem:[#allocation8 + $0x1c] sm:$0xf]
          %v2143 = vld [vmem:[#allocation8 + $0x20] sm:$0xf]
          %v2144 = vld [vmem:[#allocation8 + $0x24] sm:$0xf]
          %v2145 = vld [vmem:[#allocation8 + $0x28] sm:$0xf]
          %v2146 = vld [vmem:[#allocation8 + $0x2c] sm:$0xf]
          %v2147 = vld [vmem:[#allocation8 + $0x30] sm:$0xf]
          %v2148 = vld [vmem:[#allocation8 + $0x34] sm:$0xf]
          %v2149 = vld [vmem:[#allocation8 + $0x38] sm:$0xf]
          %v2150 = vld [vmem:[#allocation8 + $0x3c] sm:$0xf]
          %v2151 = vld [vmem:[#allocation9] sm:$0x1]
          %v2153 = vlaneseq
          %v2154 = vshrl.u32 %v2153, 7
          %v2155 = vsub.s32 0, %v2154
          %v2156 = vrot.slane %v2151, %v2155
          %v2174 = vunpack.c.l.b16 %v2135
          %v2175 = vunpack.c.l.b16 %v2136
          %v2176 = vunpack.c.l.b16 %v2137
          %v2177 = vunpack.c.l.b16 %v2138
          %v2178 = vunpack.c.l.b16 %v2139
          %v2179 = vunpack.c.l.b16 %v2140
          %v2180 = vunpack.c.l.b16 %v2141
          %v2181 = vunpack.c.l.b16 %v2142
          %v2182 = vunpack.c.l.b16 %v2143
          %v2183 = vunpack.c.l.b16 %v2144
          %v2184 = vunpack.c.l.b16 %v2145
          %v2185 = vunpack.c.l.b16 %v2146
          %v2186 = vunpack.c.l.b16 %v2147
          %v2187 = vunpack.c.l.b16 %v2148
          %v2188 = vunpack.c.l.b16 %v2149
          %v2189 = vunpack.c.l.b16 %v2150
          %v2190 = vpack.c.b16 %v2175, %v2174
          %v2191 = vpack.c.b16 %v2177, %v2176
          %v2192 = vpack.c.b16 %v2179, %v2178
          %v2193 = vpack.c.b16 %v2181, %v2180
          %v2194 = vpack.c.b16 %v2183, %v2182
          %v2195 = vpack.c.b16 %v2185, %v2184
          %v2196 = vpack.c.b16 %v2187, %v2186
          %v2197 = vpack.c.b16 %v2189, %v2188
          %2206 = vmatprep.subr.bf16.mxu0 0
          %2207 = vmatpush1.bf16.msra.mxu0 %v2190
          %2208 = vmatprep.subr.bf16.mxu0 0
          %2209 = vmatpush1.bf16.msra.mxu0 %v2191
          %2210 = vmatprep.subr.bf16.mxu0 0
          %2211 = vmatpush1.bf16.msra.mxu0 %v2192
          %2212 = vmatprep.subr.bf16.mxu0 0
          %2213 = vmatpush1.bf16.msra.mxu0 %v2193
          %2214 = vmatprep.subr.bf16.mxu0 0
          %2215 = vmatpush1.bf16.msra.mxu0 %v2194
          %2216 = vmatprep.subr.bf16.mxu0 0
          %2217 = vmatpush1.bf16.msra.mxu0 %v2195
          %2218 = vmatprep.subr.bf16.mxu0 0
          %2219 = vmatpush1.bf16.msra.mxu0 %v2196
          %2220 = vmatprep.subr.bf16.mxu0 0
          %2221 = vmatpush1.bf16.msra.mxu0 %v2197
          %2222 = vmatprep.subr.bf16.mxu0 0
          %2223 = vmatpush1.bf16.msra.mxu0 0
          %2224 = vmatprep.subr.bf16.mxu0 0
          %2225 = vmatpush1.bf16.msra.mxu0 0
          %2226 = vmatprep.subr.bf16.mxu0 0
          %2227 = vmatpush1.bf16.msra.mxu0 0
          %2228 = vmatprep.subr.bf16.mxu0 0
          %2229 = vmatpush1.bf16.msra.mxu0 0
          %2230 = vmatprep.subr.bf16.mxu0 0
          %2231 = vmatpush1.bf16.msra.mxu0 0
          %2232 = vmatprep.subr.bf16.mxu0 0
          %2233 = vmatpush1.bf16.msra.mxu0 0
          %2234 = vmatprep.subr.bf16.mxu0 0
          %2235 = vmatpush1.bf16.msra.mxu0 0
          %2236 = vmatprep.subr.bf16.mxu0 0
          %2237 = vmatpush1.bf16.msra.mxu0 0
          %2238 = vmatprep.mubr.bf16.mxu0 0
          %2239 = vmatmul.mubr.bf16.gmra.mrb[0].mxu0 %v2127
          %v2240 = vpop.f32.mrb[0].mxu0
          %v2241 = vadd.f32 %v2156, %v2240
          %v2242 = vpop.f32.mrb[0].mxu0
          %v2243 = vpop.f32.mrb[0].mxu0
          %v2244 = vadd.f32 %v2156, %v2243
          %v2245 = vpop.f32.mrb[0].mxu0
          %2246 = vmatprep.mubr.bf16.mxu0 0
          %2247 = vmatmul.mubr.bf16.gmra.mrb[0].mxu0 %v2128
          %v2248 = vpop.f32.mrb[0].mxu0
          %v2249 = vadd.f32 %v2156, %v2248
          %v2250 = vpop.f32.mrb[0].mxu0
          %v2251 = vpop.f32.mrb[0].mxu0
          %v2252 = vadd.f32 %v2156, %v2251
          %v2253 = vpop.f32.mrb[0].mxu0
          %2254 = vmatprep.mubr.bf16.mxu0 0
          %2255 = vmatmul.mubr.bf16.gmra.mrb[0].mxu0 %v2129
          %v2256 = vpop.f32.mrb[0].mxu0
          %v2257 = vadd.f32 %v2156, %v2256
          %v2258 = vpop.f32.mrb[0].mxu0
          %v2259 = vpop.f32.mrb[0].mxu0
          %v2260 = vadd.f32 %v2156, %v2259
          %v2261 = vpop.f32.mrb[0].mxu0
          %2262 = vmatprep.mubr.bf16.mxu0 0
          %2263 = vmatmul.mubr.bf16.gmra.mrb[0].mxu0 %v2130
          %v2264 = vpop.f32.mrb[0].mxu0
          %v2265 = vadd.f32 %v2156, %v2264
          %v2266 = vpop.f32.mrb[0].mxu0
          %v2267 = vpop.f32.mrb[0].mxu0
          %v2268 = vadd.f32 %v2156, %v2267
          %v2269 = vpop.f32.mrb[0].mxu0
          %2270 = vmatprep.mubr.bf16.mxu0 0
          %2271 = vmatmul.mubr.bf16.gmra.mrb[0].mxu0 %v2131
          %v2272 = vpop.f32.mrb[0].mxu0
          %v2273 = vadd.f32 %v2156, %v2272
          %v2274 = vpop.f32.mrb[0].mxu0
          %v2275 = vpop.f32.mrb[0].mxu0
          %v2276 = vadd.f32 %v2156, %v2275
          %v2277 = vpop.f32.mrb[0].mxu0
          %2278 = vmatprep.mubr.bf16.mxu0 0
          %2279 = vmatmul.mubr.bf16.gmra.mrb[0].mxu0 %v2132
          %v2280 = vpop.f32.mrb[0].mxu0
          %v2281 = vadd.f32 %v2156, %v2280
          %v2282 = vpop.f32.mrb[0].mxu0
          %v2283 = vpop.f32.mrb[0].mxu0
          %v2284 = vadd.f32 %v2156, %v2283
          %v2285 = vpop.f32.mrb[0].mxu0
          %2286 = vmatprep.mubr.bf16.mxu0 0
          %2287 = vmatmul.mubr.bf16.gmra.mrb[0].mxu0 %v2133
          %v2288 = vpop.f32.mrb[0].mxu0
          %v2289 = vadd.f32 %v2156, %v2288
          %v2290 = vpop.f32.mrb[0].mxu0
          %v2291 = vpop.f32.mrb[0].mxu0
          %v2292 = vadd.f32 %v2156, %v2291
          %v2293 = vpop.f32.mrb[0].mxu0
          %2294 = vmatprep.mubr.bf16.mxu0 0
          %2295 = vmatmul.mubr.bf16.gmra.mrb[0].mxu0 %v2134
          %v2296 = vpop.f32.mrb[0].mxu0
          %v2297 = vadd.f32 %v2156, %v2296
          %v2298 = vpop.f32.mrb[0].mxu0
          %v2299 = vpop.f32.mrb[0].mxu0
          %v2300 = vadd.f32 %v2156, %v2299
          %v2301 = vpop.f32.mrb[0].mxu0
          %2302 = vdwg.mxu0
          %v2303 = vmax.f32 %v2241, 0.0
          %v2304 = vmax.f32 %v2244, 0.0
          %v2305 = vmax.f32 %v2249, 0.0
          %v2306 = vmax.f32 %v2252, 0.0
          %v2307 = vmax.f32 %v2257, 0.0
          %v2308 = vmax.f32 %v2260, 0.0
          %v2309 = vmax.f32 %v2265, 0.0
          %v2310 = vmax.f32 %v2268, 0.0
          %v2311 = vmax.f32 %v2273, 0.0
          %v2312 = vmax.f32 %v2276, 0.0
          %v2313 = vmax.f32 %v2281, 0.0
          %v2314 = vmax.f32 %v2284, 0.0
          %v2315 = vmax.f32 %v2289, 0.0
          %v2316 = vmax.f32 %v2292, 0.0
          %v2317 = vmax.f32 %v2297, 0.0
          %v2318 = vmax.f32 %v2300, 0.0
          %v2319 = vpack.c.bf16 %v2304, %v2303
          %v2320 = vpack.c.bf16 %v2306, %v2305
          %v2321 = vpack.c.bf16 %v2308, %v2307
          %v2322 = vpack.c.bf16 %v2310, %v2309
          %v2323 = vpack.c.bf16 %v2312, %v2311
          %v2324 = vpack.c.bf16 %v2314, %v2313
          %v2325 = vpack.c.bf16 %v2316, %v2315
          %v2326 = vpack.c.bf16 %v2318, %v2317
          %2327 = vst [vmem:[#allocation2] sm:$0xff] %v2319
          %2328 = vst [vmem:[#allocation2 + $0x8] sm:$0xff] %v2320
          %2329 = vst [vmem:[#allocation2 + $0x10] sm:$0xff] %v2321
          %2330 = vst [vmem:[#allocation2 + $0x18] sm:$0xff] %v2322
          %2331 = vst [vmem:[#allocation2 + $0x20] sm:$0xff] %v2323
          %2332 = vst [vmem:[#allocation2 + $0x28] sm:$0xff] %v2324
          %2333 = vst [vmem:[#allocation2 + $0x30] sm:$0xff] %v2325
          %2334 = vst [vmem:[#allocation2 + $0x38] sm:$0xff] %v2326
        $region72: #{tpu_custom_call.1} parent=43 // pred_fallthru
          _
        %v2335 = vld [vmem:[#allocation2] sm:$0xff]
        %v2336 = vld [vmem:[#allocation2 + $0x8] sm:$0xff]
        %v2337 = vld [vmem:[#allocation2 + $0x10] sm:$0xff]
        %v2338 = vld [vmem:[#allocation2 + $0x18] sm:$0xff]
        %v2339 = vld [vmem:[#allocation2 + $0x20] sm:$0xff]
        %v2340 = vld [vmem:[#allocation2 + $0x28] sm:$0xff]
        %v2341 = vld [vmem:[#allocation2 + $0x30] sm:$0xff]
        %v2342 = vld [vmem:[#allocation2 + $0x38] sm:$0xff]
        %v2343 = vld [vmem:[%s350] sm:$0xff]
        %v2344 = vld [vmem:[%s350 + $0x8] sm:$0xff]
        %v2345 = vld [vmem:[%s350 + $0x10] sm:$0xff]
        %v2346 = vld [vmem:[%s350 + $0x18] sm:$0xff]
        %v2347 = vld [vmem:[%s350 + $0x20] sm:$0xff]
        %v2348 = vld [vmem:[%s350 + $0x28] sm:$0xff]
        %v2349 = vld [vmem:[%s350 + $0x30] sm:$0xff]
        %v2350 = vld [vmem:[%s350 + $0x38] sm:$0xff]
        %v2351 = vld [vmem:[%s350 + $0x40] sm:$0xff]
        %v2352 = vld [vmem:[%s350 + $0x48] sm:$0xff]
        %v2353 = vld [vmem:[%s350 + $0x50] sm:$0xff]
        %v2354 = vld [vmem:[%s350 + $0x58] sm:$0xff]
        %v2355 = vld [vmem:[%s350 + $0x60] sm:$0xff]
        %v2356 = vld [vmem:[%s350 + $0x68] sm:$0xff]
        %v2357 = vld [vmem:[%s350 + $0x70] sm:$0xff]
        %v2358 = vld [vmem:[%s350 + $0x78] sm:$0xff]
        %v2359 = vld [vmem:[%s359] sm:$0x3]
        %v2361 = vlaneseq
        %v2362 = vshrl.u32 %v2361, 7
        %v2363 = vsub.s32 0, %v2362
        %v2364 = vrot.slane %v2359, %v2363
        %v2365 = vlaneseq
        %v2366 = vshrl.u32 %v2365, 7
        %v2367 = vsub.s32 1, %v2366
        %v2368 = vrot.slane %v2359, %v2367
        %v2387 = vunpack.c.l.b16 %v2343
        %v2388 = vunpack.c.h.b16 %v2343
        %v2389 = vunpack.c.l.b16 %v2344
        %v2390 = vunpack.c.h.b16 %v2344
        %v2391 = vunpack.c.l.b16 %v2345
        %v2392 = vunpack.c.h.b16 %v2345
        %v2393 = vunpack.c.l.b16 %v2346
        %v2394 = vunpack.c.h.b16 %v2346
        %v2395 = vunpack.c.l.b16 %v2347
        %v2396 = vunpack.c.h.b16 %v2347
        %v2397 = vunpack.c.l.b16 %v2348
        %v2398 = vunpack.c.h.b16 %v2348
        %v2399 = vunpack.c.l.b16 %v2349
        %v2400 = vunpack.c.h.b16 %v2349
        %v2401 = vunpack.c.l.b16 %v2350
        %v2402 = vunpack.c.h.b16 %v2350
        %v2403 = vunpack.c.l.b16 %v2351
        %v2404 = vunpack.c.h.b16 %v2351
        %v2405 = vunpack.c.l.b16 %v2352
        %v2406 = vunpack.c.h.b16 %v2352
        %v2407 = vunpack.c.l.b16 %v2353
        %v2408 = vunpack.c.h.b16 %v2353
        %v2409 = vunpack.c.l.b16 %v2354
        %v2410 = vunpack.c.h.b16 %v2354
        %v2411 = vunpack.c.l.b16 %v2355
        %v2412 = vunpack.c.h.b16 %v2355
        %v2413 = vunpack.c.l.b16 %v2356
        %v2414 = vunpack.c.h.b16 %v2356
        %v2415 = vunpack.c.l.b16 %v2357
        %v2416 = vunpack.c.h.b16 %v2357
        %v2417 = vunpack.c.l.b16 %v2358
        %v2418 = vunpack.c.h.b16 %v2358
        %v2419 = vpack.c.b16 %v2389, %v2387
        %v2420 = vpack.c.b16 %v2390, %v2388
        %v2421 = vpack.c.b16 %v2393, %v2391
        %v2422 = vpack.c.b16 %v2394, %v2392
        %v2423 = vpack.c.b16 %v2397, %v2395
        %v2424 = vpack.c.b16 %v2398, %v2396
        %v2425 = vpack.c.b16 %v2401, %v2399
        %v2426 = vpack.c.b16 %v2402, %v2400
        %v2427 = vpack.c.b16 %v2405, %v2403
        %v2428 = vpack.c.b16 %v2406, %v2404
        %v2429 = vpack.c.b16 %v2409, %v2407
        %v2430 = vpack.c.b16 %v2410, %v2408
        %v2431 = vpack.c.b16 %v2413, %v2411
        %v2432 = vpack.c.b16 %v2414, %v2412
        %v2433 = vpack.c.b16 %v2417, %v2415
        %v2434 = vpack.c.b16 %v2418, %v2416
        %2451 = vmatprep.subr.bf16.mxu0 %v2420
        %2452 = vmatpush1.bf16.msra.mxu0 %v2419
        %2453 = vmatprep.subr.bf16.mxu0 %v2422
        %2454 = vmatpush1.bf16.msra.mxu0 %v2421
        %2455 = vmatprep.subr.bf16.mxu0 %v2424
        %2456 = vmatpush1.bf16.msra.mxu0 %v2423
        %2457 = vmatprep.subr.bf16.mxu0 %v2426
        %2458 = vmatpush1.bf16.msra.mxu0 %v2425
        %2459 = vmatprep.subr.bf16.mxu0 %v2428
        %2460 = vmatpush1.bf16.msra.mxu0 %v2427
        %2461 = vmatprep.subr.bf16.mxu0 %v2430
        %2462 = vmatpush1.bf16.msra.mxu0 %v2429
        %2463 = vmatprep.subr.bf16.mxu0 %v2432
        %2464 = vmatpush1.bf16.msra.mxu0 %v2431
        %2465 = vmatprep.subr.bf16.mxu0 %v2434
        %2466 = vmatpush1.bf16.msra.mxu0 %v2433
        %2467 = vmatprep.subr.bf16.mxu0 0
        %2468 = vmatpush1.bf16.msra.mxu0 0
        %2469 = vmatprep.subr.bf16.mxu0 0
        %2470 = vmatpush1.bf16.msra.mxu0 0
        %2471 = vmatprep.subr.bf16.mxu0 0
        %2472 = vmatpush1.bf16.msra.mxu0 0
        %2473 = vmatprep.subr.bf16.mxu0 0
        %2474 = vmatpush1.bf16.msra.mxu0 0
        %2475 = vmatprep.subr.bf16.mxu0 0
        %2476 = vmatpush1.bf16.msra.mxu0 0
        %2477 = vmatprep.subr.bf16.mxu0 0
        %2478 = vmatpush1.bf16.msra.mxu0 0
        %2479 = vmatprep.subr.bf16.mxu0 0
        %2480 = vmatpush1.bf16.msra.mxu0 0
        %2481 = vmatprep.subr.bf16.mxu0 0
        %2482 = vmatpush1.bf16.msra.mxu0 0
        %2483 = vmatprep.mubr.bf16.mxu0 0
        %2484 = vmatmul.mubr.bf16.gmra.mrb[0].mxu0 %v2335
        %v2485 = vpop.f32.mrb[0].mxu0
        %v2486 = vadd.f32 %v2364, %v2485
        %v2487 = vpop.f32.mrb[0].mxu0
        %v2488 = vadd.f32 %v2368, %v2487
        %v2489 = vpop.f32.mrb[0].mxu0
        %v2490 = vadd.f32 %v2364, %v2489
        %v2491 = vpop.f32.mrb[0].mxu0
        %v2492 = vadd.f32 %v2368, %v2491
        %2493 = vmatprep.mubr.bf16.mxu0 0
        %2494 = vmatmul.mubr.bf16.gmra.mrb[0].mxu0 %v2336
        %v2495 = vpop.f32.mrb[0].mxu0
        %v2496 = vadd.f32 %v2364, %v2495
        %v2497 = vpop.f32.mrb[0].mxu0
        %v2498 = vadd.f32 %v2368, %v2497
        %v2499 = vpop.f32.mrb[0].mxu0
        %v2500 = vadd.f32 %v2364, %v2499
        %v2501 = vpop.f32.mrb[0].mxu0
        %v2502 = vadd.f32 %v2368, %v2501
        %2503 = vmatprep.mubr.bf16.mxu0 0
        %2504 = vmatmul.mubr.bf16.gmra.mrb[0].mxu0 %v2337
        %v2505 = vpop.f32.mrb[0].mxu0
        %v2506 = vadd.f32 %v2364, %v2505
        %v2507 = vpop.f32.mrb[0].mxu0
        %v2508 = vadd.f32 %v2368, %v2507
        %v2509 = vpop.f32.mrb[0].mxu0
        %v2510 = vadd.f32 %v2364, %v2509
        %v2511 = vpop.f32.mrb[0].mxu0
        %v2512 = vadd.f32 %v2368, %v2511
        %2513 = vmatprep.mubr.bf16.mxu0 0
        %2514 = vmatmul.mubr.bf16.gmra.mrb[0].mxu0 %v2338
        %v2515 = vpop.f32.mrb[0].mxu0
        %v2516 = vadd.f32 %v2364, %v2515
        %v2517 = vpop.f32.mrb[0].mxu0
        %v2518 = vadd.f32 %v2368, %v2517
        %v2519 = vpop.f32.mrb[0].mxu0
        %v2520 = vadd.f32 %v2364, %v2519
        %v2521 = vpop.f32.mrb[0].mxu0
        %v2522 = vadd.f32 %v2368, %v2521
        %2523 = vmatprep.mubr.bf16.mxu0 0
        %2524 = vmatmul.mubr.bf16.gmra.mrb[0].mxu0 %v2339
        %v2525 = vpop.f32.mrb[0].mxu0
        %v2526 = vadd.f32 %v2364, %v2525
        %v2527 = vpop.f32.mrb[0].mxu0
        %v2528 = vadd.f32 %v2368, %v2527
        %v2529 = vpop.f32.mrb[0].mxu0
        %v2530 = vadd.f32 %v2364, %v2529
        %v2531 = vpop.f32.mrb[0].mxu0
        %v2532 = vadd.f32 %v2368, %v2531
        %2533 = vmatprep.mubr.bf16.mxu0 0
        %2534 = vmatmul.mubr.bf16.gmra.mrb[0].mxu0 %v2340
        %v2535 = vpop.f32.mrb[0].mxu0
        %v2536 = vadd.f32 %v2364, %v2535
        %v2537 = vpop.f32.mrb[0].mxu0
        %v2538 = vadd.f32 %v2368, %v2537
        %v2539 = vpop.f32.mrb[0].mxu0
        %v2540 = vadd.f32 %v2364, %v2539
        %v2541 = vpop.f32.mrb[0].mxu0
        %v2542 = vadd.f32 %v2368, %v2541
        %2543 = vmatprep.mubr.bf16.mxu0 0
        %2544 = vmatmul.mubr.bf16.gmra.mrb[0].mxu0 %v2341
        %v2545 = vpop.f32.mrb[0].mxu0
        %v2546 = vadd.f32 %v2364, %v2545
        %v2547 = vpop.f32.mrb[0].mxu0
        %v2548 = vadd.f32 %v2368, %v2547
        %v2549 = vpop.f32.mrb[0].mxu0
        %v2550 = vadd.f32 %v2364, %v2549
        %v2551 = vpop.f32.mrb[0].mxu0
        %v2552 = vadd.f32 %v2368, %v2551
        %2553 = vmatprep.mubr.bf16.mxu0 0
        %2554 = vmatmul.mubr.bf16.gmra.mrb[0].mxu0 %v2342
        %v2555 = vpop.f32.mrb[0].mxu0
        %v2556 = vadd.f32 %v2364, %v2555
        %v2557 = vpop.f32.mrb[0].mxu0
        %v2558 = vadd.f32 %v2368, %v2557
        %v2559 = vpop.f32.mrb[0].mxu0
        %v2560 = vadd.f32 %v2364, %v2559
        %v2561 = vpop.f32.mrb[0].mxu0
        %v2562 = vadd.f32 %v2368, %v2561
        %2563 = vdwg.mxu0
        %2564 = vst [vmem:[%s397] sm:$0xff] %v2486
        %2565 = vst [vmem:[%s397 + $0x8] sm:$0xff] %v2488
        %2566 = vst [vmem:[%s397 + $0x10] sm:$0xff] %v2490
        %2567 = vst [vmem:[%s397 + $0x18] sm:$0xff] %v2492
        %2568 = vst [vmem:[%s397 + $0x20] sm:$0xff] %v2496
        %2569 = vst [vmem:[%s397 + $0x28] sm:$0xff] %v2498
        %2570 = vst [vmem:[%s397 + $0x30] sm:$0xff] %v2500
        %2571 = vst [vmem:[%s397 + $0x38] sm:$0xff] %v2502
        %2572 = vst [vmem:[%s397 + $0x40] sm:$0xff] %v2506
        %2573 = vst [vmem:[%s397 + $0x48] sm:$0xff] %v2508
        %2574 = vst [vmem:[%s397 + $0x50] sm:$0xff] %v2510
        %2575 = vst [vmem:[%s397 + $0x58] sm:$0xff] %v2512
        %2576 = vst [vmem:[%s397 + $0x60] sm:$0xff] %v2516
        %2577 = vst [vmem:[%s397 + $0x68] sm:$0xff] %v2518
        %2578 = vst [vmem:[%s397 + $0x70] sm:$0xff] %v2520
        %2579 = vst [vmem:[%s397 + $0x78] sm:$0xff] %v2522
        %2580 = vst [vmem:[%s397 + $0x80] sm:$0xff] %v2526
        %2581 = vst [vmem:[%s397 + $0x88] sm:$0xff] %v2528
        %2582 = vst [vmem:[%s397 + $0x90] sm:$0xff] %v2530
        %2583 = vst [vmem:[%s397 + $0x98] sm:$0xff] %v2532
        %2584 = vst [vmem:[%s397 + $0xa0] sm:$0xff] %v2536
        %2585 = vst [vmem:[%s397 + $0xa8] sm:$0xff] %v2538
        %2586 = vst [vmem:[%s397 + $0xb0] sm:$0xff] %v2540
        %2587 = vst [vmem:[%s397 + $0xb8] sm:$0xff] %v2542
        %2588 = vst [vmem:[%s397 + $0xc0] sm:$0xff] %v2546
        %2589 = vst [vmem:[%s397 + $0xc8] sm:$0xff] %v2548
        %2590 = vst [vmem:[%s397 + $0xd0] sm:$0xff] %v2550
        %2591 = vst [vmem:[%s397 + $0xd8] sm:$0xff] %v2552
        %2592 = vst [vmem:[%s397 + $0xe0] sm:$0xff] %v2556
        %2593 = vst [vmem:[%s397 + $0xe8] sm:$0xff] %v2558
        %2594 = vst [vmem:[%s397 + $0xf0] sm:$0xff] %v2560
        %2595 = vst [vmem:[%s397 + $0xf8] sm:$0xff] %v2562
        %s2596 = sand.u32 %s188, 1
        %s2597 = scalar_lea.sflag [#allocation5], %s2596
        %s2598 = sand.u32 %s188, 1
        %s2599 = smul.addr %s2598, 256
        %s2600 = scalar_lea.vmem [#allocation13], %s2599
        // Predicated region
        $region73: #{tpu_custom_call.1} parent=43 // pred_check
          %p2601 = pneg %p198
        $region74: #{tpu_custom_call.1} parent=43 // pred_check_branch
          %2603 = sbr.rel (%p2601) target = $region76
        $region75: #{tpu_custom_call.1} parent=43 // pred_region
          %s2604 = smul.u32 16, %s29
          %s2605 = smul.u32 2, %s30
          %s2607 = ssub.s32 4096, 4096
          %2608 = vsyncadd %s2597, %s2607
          %s2609 = smul.addr %s2604, 4
          %s2610 = sadd.s32 %s2605, %s2609
          %s2611 = smul.addr %s2610, 128
          %s2612 = scalar_lea.hbm %s6, %s2611
          %s2613 = sshll.u32 %s2600, 4
          %s2614 = int_to_ptr.vmem [resolvable:$true] %s2613
          %2619 = dma.vmem_to_hbm [thread:$0]  %s2614, 4096, %s2612, %s2597, 256, 512, 16
        $region76: #{tpu_custom_call.1} parent=43 // pred_fallthru
          _
      $region44: #{tpu_custom_call.1} parent=5 // pred_fallthru
        _
      %p2620 = scmp.le.s32.totalorder 2, %s20
      // Predicated region
      $region77: #{tpu_custom_call.1} parent=5 // pred_check
        %p2621 = pneg %p2620
      $region78: #{tpu_custom_call.1} parent=5 // pred_check_branch
        %2623 = sbr.rel (%p2621) target = $region80
      $region79: #{tpu_custom_call.1} parent=5 // pred_region
        %s2624 = ssub.s32 %s20, 2
        // Predicated region
        $region81: #{tpu_custom_call.1} parent=79 // pred_check
          %p2625 = pneg %p204
        $region82: #{tpu_custom_call.1} parent=79 // pred_check_branch
          %2627 = sbr.rel (%p2625) target = $region84
        $region83: #{tpu_custom_call.1} parent=79 // pred_region
          %s2628 = sand.u32 %s189, 1
          %s2629 = scalar_lea.sflag [#allocation5], %s2628
          %s2630 = sand.u32 %s189, 1
          %s2631 = smul.addr %s2630, 256
          %s2632 = scalar_lea.vmem [#allocation13], %s2631
          %2633 = dma.done %s2629, 4096
        $region84: #{tpu_custom_call.1} parent=79 // pred_fallthru
          _
      $region80: #{tpu_custom_call.1} parent=5 // pred_fallthru
        _
    $region6: #{tpu_custom_call.1} parent=1 // loop_footer
      %s24 = sadd.s32 1, %s20
    $region7: #{tpu_custom_call.1} parent=1 // loop_footer_branch
      %19 = sbr.rel target = $region3
    $region8: #{tpu_custom_call.1} parent=1 // loop_exit
      _
    %2634 = vsyncpa [#allocation4], 1
    %s2635 = scalar_lea.sflag [#allocation4], 1
    %2636 = vsyncpa %s2635, 1
    %2637 = vsyncpa [#allocation7], 1
    %2638 = vsyncpa [#allocation10], 1
    %2639 = vsyncpa [#allocation5], 1
    %s2640 = scalar_lea.sflag [#allocation5], 1
    %2641 = vsyncpa %s2640, 1

</llo_original>
